<compile_context>
chip_gen: v7x
topology: tpu7x:2x2x1
jax: 0.10.0
libtpu: 0.0.40
codegen_flags: <defaults>
</compile_context>

<pallas_src>
import functools

import jax
import jax.numpy as jnp
from jax.experimental import pallas as pl
from jax.experimental.pallas import tpu as pltpu


# ----------------------------------------------------------------------------
# Small helpers
# ----------------------------------------------------------------------------
def _round_up(x, m):
    return (x + m - 1) // m * m


def _pad2(x, rows, cols):
    return jnp.pad(x, ((0, rows - x.shape[0]), (0, cols - x.shape[1])))


def _conv_out_hw(h, w):
    # conv1: k=8 s=4; conv2: k=4 s=2; conv3: k=3 s=1  (PyTorch floor semantics)
    h = (h - 8) // 4 + 1; w = (w - 8) // 4 + 1
    h = (h - 4) // 2 + 1; w = (w - 4) // 2 + 1
    h = (h - 3) // 1 + 1; w = (w - 3) // 1 + 1
    return h, w


# ----------------------------------------------------------------------------
# Pallas kernel 1: fused (X @ W + b) with optional ReLU.  Used by all convs
# (after im2col).  bf16 operands, f32 accumulate / bias / ReLU / store.
# ----------------------------------------------------------------------------
def _matmul_bias_kernel(x_ref, w_ref, b_ref, o_ref, *, relu):
    acc = jnp.dot(x_ref[...], w_ref[...], preferred_element_type=jnp.float32)
    acc = acc + b_ref[...]                      # (1, N) broadcasts over (TM, N)
    if relu:
        acc = jnp.maximum(acc, 0.0)
    o_ref[...] = acc.astype(o_ref.dtype)


def pallas_matmul_bias(x, w_pad, b_pad, *, relu, n_out, tm_max=512):
    """x: [M, K] float, w_pad: [K_pad, N_pad] bf16 (zero-padded),
    b_pad: [1, N_pad] f32 (zero-padded) -> [M, n_out] f32."""
    M, K = x.shape
    K_pad, N_pad = w_pad.shape

    TM = min(tm_max, _round_up(max(M, 1), 8))   # sublane-aligned M tile
    M_pad = _round_up(M, TM)
    grid = (M_pad // TM,)

    xb = jnp.pad(x.astype(jnp.bfloat16), ((0, M_pad - M), (0, K_pad - K)))

    cost = pl.CostEstimate(
        flops=2 * M_pad * K_pad * N_pad,
        transcendentals=0,
        bytes_accessed=(M_pad * K_pad * 2 + K_pad * N_pad * 2
                        + N_pad * 4 + M_pad * N_pad * 4),
    )

    out = pl.pallas_call(
        functools.partial(_matmul_bias_kernel, relu=relu),
        out_shape=jax.ShapeDtypeStruct((M_pad, N_pad), jnp.float32),
        grid=grid,
        in_specs=[
            pl.BlockSpec((TM, K_pad), lambda i: (i, 0)),    # M-tiled activations
            pl.BlockSpec((K_pad, N_pad), lambda i: (0, 0)), # whole weight, resident
            pl.BlockSpec((1, N_pad), lambda i: (0, 0)),     # bias row
        ],
        out_specs=pl.BlockSpec((TM, N_pad), lambda i: (i, 0)),
        compiler_params=pltpu.CompilerParams(
            dimension_semantics=("parallel",)),             # 2 TCs on v7x
        cost_estimate=cost,
    )(xb, w_pad, b_pad)

    return out[:M, :n_out]


# ----------------------------------------------------------------------------
# Pallas kernel 2: fused 3-layer MLP (f1 -> ReLU -> f2 -> ReLU -> f3).
# All weights live in VMEM for the whole call; one launch, one HBM round-trip.
# ----------------------------------------------------------------------------
def _fused_mlp_kernel(x_ref, w1_ref, b1_ref, w2_ref, b2_ref, w3_ref, b3_ref,
                      o_ref):
    h = jnp.dot(x_ref[...], w1_ref[...], preferred_element_type=jnp.float32)
    h = jnp.maximum(h + b1_ref[...], 0.0)
    h = jnp.dot(h.astype(jnp.bfloat16), w2_ref[...],
                preferred_element_type=jnp.float32)
    h = jnp.maximum(h + b2_ref[...], 0.0)
    h = jnp.dot(h.astype(jnp.bfloat16), w3_ref[...],
                preferred_element_type=jnp.float32)
    o_ref[...] = (h + b3_ref[...]).astype(o_ref.dtype)


def pallas_fused_mlp(x, w1, b1, w2, b2, w3, b3, *, n_out, tm_max=512):
    M, K = x.shape
    K1, N1 = w1.shape
    K2, N2 = w2.shape
    K3, N3 = w3.shape

    TM = min(tm_max, _round_up(max(M, 1), 8))
    M_pad = _round_up(M, TM)
    grid = (M_pad // TM,)

    xb = jnp.pad(x.astype(jnp.bfloat16), ((0, M_pad - M), (0, K1 - K)))

    cost = pl.CostEstimate(
        flops=2 * M_pad * (K1 * N1 + K2 * N2 + K3 * N3),
        transcendentals=0,
        bytes_accessed=((M_pad * K1 + K1 * N1 + K2 * N2 + K3 * N3) * 2
                        + (N1 + N2 + N3) * 4 + M_pad * N3 * 4),
    )

    out = pl.pallas_call(
        _fused_mlp_kernel,
        out_shape=jax.ShapeDtypeStruct((M_pad, N3), jnp.float32),
        grid=grid,
        in_specs=[
            pl.BlockSpec((TM, K1), lambda i: (i, 0)),
            pl.BlockSpec((K1, N1), lambda i: (0, 0)),
            pl.BlockSpec((1, N1), lambda i: (0, 0)),
            pl.BlockSpec((K2, N2), lambda i: (0, 0)),
            pl.BlockSpec((1, N2), lambda i: (0, 0)),
            pl.BlockSpec((K3, N3), lambda i: (0, 0)),
            pl.BlockSpec((1, N3), lambda i: (0, 0)),
        ],
        out_specs=pl.BlockSpec((TM, N3), lambda i: (i, 0)),
        compiler_params=pltpu.CompilerParams(
            dimension_semantics=("parallel",)),
        cost_estimate=cost,
    )(xb, w1, b1, w2, b2, w3, b3)

    return out[:M, :n_out]


# ----------------------------------------------------------------------------
# Glue: NHWC im2col patch extraction (pure data movement, plain JAX).
# K axis ordered (kh, kw, ic), matching the pre-transposed conv weights.
# ----------------------------------------------------------------------------
def _im2col_nhwc(x, kh, kw, stride):
    n, h, w, c = x.shape
    oh = (h - kh) // stride + 1
    ow = (w - kw) // stride + 1
    cols = []
    for i in range(kh):
        for j in range(kw):
            cols.append(x[:, i:i + stride * oh:stride,
                          j:j + stride * ow:stride, :])
    p = jnp.stack(cols, axis=3)                      # [N, OH, OW, KH*KW, C]
    p = p.reshape(n * oh * ow, kh * kw * c)          # K = (kh*KW + kw)*C + ic
    return p, oh, ow


def pallas_conv2d_nhwc(x, w_pad, b_pad, *, oc, kh, kw, stride, relu):
    """x: [N, H, W, C]; w_pad: [round128(KH*KW*C), round128(OC)] bf16;
    b_pad: [1, round128(OC)] f32.  Returns NHWC [N, OH, OW, OC] f32."""
    n = x.shape[0]
    patches, oh, ow = _im2col_nhwc(x, kh, kw, stride)
    out = pallas_matmul_bias(patches, w_pad, b_pad, relu=relu, n_out=oc)
    return out.reshape(n, oh, ow, oc)                # stays NHWC — no transpose


# ----------------------------------------------------------------------------
# Parameters: PyTorch-layout init + one-time conversion to kernel layout.
# ----------------------------------------------------------------------------
def init_conv_dqn_params(key, input_dim, output_dim):
    """PyTorch-compatible layout: conv [OC, IC, KH, KW]; linear stored as
    [in, out] (= torch weight.T); fc1 'in' axis indexed in NCHW-flatten order."""
    c, h, w = input_dim
    oh, ow = _conv_out_hw(h, w)
    fc_in = 64 * oh * ow                              # == ConvDQN.feature_size()
    ks = jax.random.split(key, 12)

    def wN(k, shape, fan_in):
        return jax.random.normal(k, shape, jnp.float32) * (1.0 / jnp.sqrt(fan_in))

    return {
        "c1_w": wN(ks[0], (32, c, 8, 8), c * 64),   "c1_b": wN(ks[1], (32,), c * 64),
        "c2_w": wN(ks[2], (64, 32, 4, 4), 32 * 16), "c2_b": wN(ks[3], (64,), 32 * 16),
        "c3_w": wN(ks[4], (64, 64, 3, 3), 64 * 9),  "c3_b": wN(ks[5], (64,), 64 * 9),
        "f1_w": wN(ks[6], (fc_in, 128), fc_in),     "f1_b": wN(ks[7], (128,), fc_in),
        "f2_w": wN(ks[8], (128, 256), 128),         "f2_b": wN(ks[9], (256,), 128),
        "f3_w": wN(ks[10], (256, output_dim), 256), "f3_b": wN(ks[11], (output_dim,), 256),
    }


def prepare_params(params, input_dim):
    """One-time conversion to kernel-friendly layout:
      - conv weights -> [KH*KW*IC, OC] (NHWC patch order), zero-padded to
        multiples of 128 on both axes, bf16.
      - fc1 weight rows permuted from NCHW-flatten (c,h,w) to NHWC-flatten
        (h,w,c) so the kernel's NHWC flatten matches torch semantics exactly.
      - all linear weights zero-padded to 128 multiples, bf16; biases f32 [1,N]."""
    c, h, w = input_dim
    oh, ow = _conv_out_hw(h, w)

    def conv_w(wt):
        oc, ic, kh, kw = wt.shape
        wm = jnp.transpose(wt, (2, 3, 1, 0)).reshape(kh * kw * ic, oc)
        wm = _pad2(wm, _round_up(kh * kw * ic, 128), _round_up(oc, 128))
        return wm.astype(jnp.bfloat16)

    def lin_w(wm):
        k, n = wm.shape
        return _pad2(wm, _round_up(k, 128), _round_up(n, 128)).astype(jnp.bfloat16)

    def bias(b):
        n = b.shape[0]
        bp = jnp.pad(b.astype(jnp.float32), (0, _round_up(n, 128) - n))
        return bp.reshape(1, -1)

    # fc1: permute rows (c, oh, ow) -> (oh, ow, c)
    f1 = params["f1_w"].reshape(64, oh, ow, -1)
    f1 = jnp.transpose(f1, (1, 2, 0, 3)).reshape(64 * oh * ow, -1)

    return {
        "c1_w": conv_w(params["c1_w"]), "c1_b": bias(params["c1_b"]),
        "c2_w": conv_w(params["c2_w"]), "c2_b": bias(params["c2_b"]),
        "c3_w": conv_w(params["c3_w"]), "c3_b": bias(params["c3_b"]),
        "f1_w": lin_w(f1),              "f1_b": bias(params["f1_b"]),
        "f2_w": lin_w(params["f2_w"]),  "f2_b": bias(params["f2_b"]),
        "f3_w": lin_w(params["f3_w"]),  "f3_b": bias(params["f3_b"]),
    }


# ----------------------------------------------------------------------------
# ConvDQN forward (Pallas) + pure-JAX reference
# ----------------------------------------------------------------------------
def conv_dqn_forward(kparams, state, *, output_dim):
    # state: [N, C, H, W] (torch convention); convert to NHWC exactly once.
    x = jnp.transpose(state, (0, 2, 3, 1))
    x = pallas_conv2d_nhwc(x, kparams["c1_w"], kparams["c1_b"],
                           oc=32, kh=8, kw=8, stride=4, relu=True)
    x = pallas_conv2d_nhwc(x, kparams["c2_w"], kparams["c2_b"],
                           oc=64, kh=4, kw=4, stride=2, relu=True)
    x = pallas_conv2d_nhwc(x, kparams["c3_w"], kparams["c3_b"],
                           oc=64, kh=3, kw=3, stride=1, relu=True)
    n = x.shape[0]
    feat = x.reshape(n, -1)          # NHWC flatten; fc1 rows pre-permuted to match
    q = pallas_fused_mlp(feat,
                         kparams["f1_w"], kparams["f1_b"],
                         kparams["f2_w"], kparams["f2_b"],
                         kparams["f3_w"], kparams["f3_b"],
                         n_out=output_dim)
    return q


def conv_dqn_forward_ref(params, state):
    """Pure-JAX f32 reference matching the PyTorch module (for validation)."""
    def conv(x, w, b, stride):
        y = jax.lax.conv_general_dilated(
            x, w, window_strides=(stride, stride), padding="VALID",
            dimension_numbers=("NCHW", "OIHW", "NCHW"))
        return y + b.reshape(1, -1, 1, 1)
    x = jax.nn.relu(conv(state, params["c1_w"], params["c1_b"], 4))
    x = jax.nn.relu(conv(x, params["c2_w"], params["c2_b"], 2))
    x = jax.nn.relu(conv(x, params["c3_w"], params["c3_b"], 1))
    feat = x.reshape(x.shape[0], -1)
    h = jax.nn.relu(feat @ params["f1_w"] + params["f1_b"])
    h = jax.nn.relu(h @ params["f2_w"] + params["f2_b"])
    return h @ params["f3_w"] + params["f3_b"]


if __name__ == "__main__":
    # Smallest spatial size the conv stack (k8s4, k4s2, k3s1) supports is 36.
    input_dim = (4, 36, 36)
    output_dim = 6
    batch = 2

    key = jax.random.PRNGKey(0)
    k_x, k_p = jax.random.split(key)
    x = jax.random.normal(k_x, (batch,) + input_dim, jnp.float32)

    params = init_conv_dqn_params(k_p, input_dim, output_dim)
    kparams = prepare_params(params, input_dim)

    fwd = jax.jit(functools.partial(conv_dqn_forward, output_dim=output_dim))
    q = fwd(kparams, x)
    jax.block_until_ready(q)

    q_ref = jax.jit(conv_dqn_forward_ref)(params, x)
    max_err = float(jnp.max(jnp.abs(q - q_ref)))

    assert q.shape == (batch, output_dim), q.shape
    assert q.dtype == jnp.float32
    assert bool(jnp.all(jnp.isfinite(q)))
    # bf16 matmul operands (f32 accumulate) -> small rounding vs f32 reference.
    assert max_err < 1e-1, max_err
    print("KERNEL_OK")
</pallas_src>

<mosaic_0001>
module attributes {stable_mosaic.version = 11 : i64} {
  func.func @_matmul_bias_kernel(%arg0: i32, %arg1: memref<128x256xbf16, #tpu.memory_space<vmem>>, %arg2: memref<256x128xbf16, #tpu.memory_space<vmem>>, %arg3: memref<1x128xf32, #tpu.memory_space<vmem>>, %arg4: memref<128x128xf32, #tpu.memory_space<vmem>>) attributes {dimension_semantics = [#tpu.dimension_semantics<parallel>], iteration_bounds = array<i64: 1>, scalar_prefetch = 0 : i64, scratch_operands = 0 : i64, tpu.core_type = #tpu.core_type<tc>, window_params = [{transform_indices = @transform_0, window_bounds = array<i64: 128, 256>}, {pipeline_mode = #tpu.pipeline_mode<synchronous>, transform_indices = @transform_1, window_bounds = array<i64: 256, 128>}, {pipeline_mode = #tpu.pipeline_mode<synchronous>, transform_indices = @transform_2, window_bounds = array<i64: 1, 128>}, {transform_indices = @transform_3, window_bounds = array<i64: 128, 128>}]} {
    %c0 = arith.constant 0 : index
    %c0_0 = arith.constant 0 : index
    %0 = vector.load %arg1[%c0, %c0_0] : memref<128x256xbf16, #tpu.memory_space<vmem>>, vector<128x256xbf16>
    %c0_1 = arith.constant 0 : index
    %c0_2 = arith.constant 0 : index
    %1 = vector.load %arg2[%c0_1, %c0_2] : memref<256x128xbf16, #tpu.memory_space<vmem>>, vector<256x128xbf16>
    %cst = arith.constant dense<0.000000e+00> : vector<128x128xf32>
    %2 = tpu.matmul %0, %1, %cst {dimension_numbers = #tpu.dot_dimension_numbers<[1], [0], [0], [1], [0, 0, 1, 1], [], []>} : vector<128x256xbf16>, vector<256x128xbf16>, vector<128x128xf32> -> vector<128x128xf32>
    %c0_3 = arith.constant 0 : index
    %c0_4 = arith.constant 0 : index
    %3 = vector.load %arg3[%c0_3, %c0_4] : memref<1x128xf32, #tpu.memory_space<vmem>>, vector<1x128xf32>
    %4 = vector.broadcast %3 : vector<1x128xf32> to vector<128x128xf32>
    %5 = arith.addf %2, %4 : vector<128x128xf32>
    %cst_5 = arith.constant 0.000000e+00 : f32
    %6 = vector.broadcast %cst_5 : f32 to vector<128x128xf32>
    %7 = arith.maximumf %5, %6 : vector<128x128xf32>
    %c0_6 = arith.constant 0 : index
    %c0_7 = arith.constant 0 : index
    %8 = vector.load %arg4[%c0_6, %c0_7] : memref<128x128xf32, #tpu.memory_space<vmem>>, vector<128x128xf32>
    tpu.vector_store %arg4[%c0_6, %c0_7], %7 {strides = array<i32>} : memref<128x128xf32, #tpu.memory_space<vmem>>, vector<128x128xf32>,
    return
  }
  func.func @transform_0(%arg0: i32) -> (i32, i32) {
    %c0_i32 = arith.constant 0 : i32
    %c0_i32_0 = arith.constant 0 : i32
    return %arg0, %c0_i32 : i32, i32
  }
  func.func @transform_1(%arg0: i32) -> (i32, i32) {
    %c0_i32 = arith.constant 0 : i32
    %c0_i32_0 = arith.constant 0 : i32
    %c0_i32_1 = arith.constant 0 : i32
    return %c0_i32, %c0_i32_0 : i32, i32
  }
  func.func @transform_2(%arg0: i32) -> (i32, i32) {
    %c0_i32 = arith.constant 0 : i32
    %c0_i32_0 = arith.constant 0 : i32
    %c0_i32_1 = arith.constant 0 : i32
    return %c0_i32, %c0_i32_0 : i32, i32
  }
  func.func @transform_3(%arg0: i32) -> (i32, i32) {
    %c0_i32 = arith.constant 0 : i32
    %c0_i32_0 = arith.constant 0 : i32
    return %arg0, %c0_i32 : i32, i32
  }
}

module attributes {stable_mosaic.version = 11 : i64} {
  func.func @_matmul_bias_kernel(%arg0: i32, %arg1: memref<24x512xbf16, #tpu.memory_space<vmem>>, %arg2: memref<512x128xbf16, #tpu.memory_space<vmem>>, %arg3: memref<1x128xf32, #tpu.memory_space<vmem>>, %arg4: memref<24x128xf32, #tpu.memory_space<vmem>>) attributes {dimension_semantics = [#tpu.dimension_semantics<parallel>], iteration_bounds = array<i64: 1>, scalar_prefetch = 0 : i64, scratch_operands = 0 : i64, tpu.core_type = #tpu.core_type<tc>, window_params = [{transform_indices = @transform_0, window_bounds = array<i64: 24, 512>}, {pipeline_mode = #tpu.pipeline_mode<synchronous>, transform_indices = @transform_1, window_bounds = array<i64: 512, 128>}, {pipeline_mode = #tpu.pipeline_mode<synchronous>, transform_indices = @transform_2, window_bounds = array<i64: 1, 128>}, {transform_indices = @transform_3, window_bounds = array<i64: 24, 128>}]} {
    %c0 = arith.constant 0 : index
    %c0_0 = arith.constant 0 : index
    %0 = vector.load %arg1[%c0, %c0_0] : memref<24x512xbf16, #tpu.memory_space<vmem>>, vector<24x512xbf16>
    %c0_1 = arith.constant 0 : index
    %c0_2 = arith.constant 0 : index
    %1 = vector.load %arg2[%c0_1, %c0_2] : memref<512x128xbf16, #tpu.memory_space<vmem>>, vector<512x128xbf16>
    %cst = arith.constant dense<0.000000e+00> : vector<24x128xf32>
    %2 = tpu.matmul %0, %1, %cst {dimension_numbers = #tpu.dot_dimension_numbers<[1], [0], [0], [1], [0, 0, 1, 1], [], []>} : vector<24x512xbf16>, vector<512x128xbf16>, vector<24x128xf32> -> vector<24x128xf32>
    %c0_3 = arith.constant 0 : index
    %c0_4 = arith.constant 0 : index
    %3 = vector.load %arg3[%c0_3, %c0_4] : memref<1x128xf32, #tpu.memory_space<vmem>>, vector<1x128xf32>
    %4 = vector.broadcast %3 : vector<1x128xf32> to vector<24x128xf32>
    %5 = arith.addf %2, %4 : vector<24x128xf32>
    %cst_5 = arith.constant 0.000000e+00 : f32
    %6 = vector.broadcast %cst_5 : f32 to vector<24x128xf32>
    %7 = arith.maximumf %5, %6 : vector<24x128xf32>
    %c0_6 = arith.constant 0 : index
    %c0_7 = arith.constant 0 : index
    %8 = vector.load %arg4[%c0_6, %c0_7] : memref<24x128xf32, #tpu.memory_space<vmem>>, vector<24x128xf32>
    tpu.vector_store %arg4[%c0_6, %c0_7], %7 {strides = array<i32>} : memref<24x128xf32, #tpu.memory_space<vmem>>, vector<24x128xf32>,
    return
  }
  func.func @transform_0(%arg0: i32) -> (i32, i32) {
    %c0_i32 = arith.constant 0 : i32
    %c0_i32_0 = arith.constant 0 : i32
    return %arg0, %c0_i32 : i32, i32
  }
  func.func @transform_1(%arg0: i32) -> (i32, i32) {
    %c0_i32 = arith.constant 0 : i32
    %c0_i32_0 = arith.constant 0 : i32
    %c0_i32_1 = arith.constant 0 : i32
    return %c0_i32, %c0_i32_0 : i32, i32
  }
  func.func @transform_2(%arg0: i32) -> (i32, i32) {
    %c0_i32 = arith.constant 0 : i32
    %c0_i32_0 = arith.constant 0 : i32
    %c0_i32_1 = arith.constant 0 : i32
    return %c0_i32, %c0_i32_0 : i32, i32
  }
  func.func @transform_3(%arg0: i32) -> (i32, i32) {
    %c0_i32 = arith.constant 0 : i32
    %c0_i32_0 = arith.constant 0 : i32
    return %arg0, %c0_i32 : i32, i32
  }
}

module attributes {stable_mosaic.version = 11 : i64} {
  func.func @_matmul_bias_kernel(%arg0: i32, %arg1: memref<8x640xbf16, #tpu.memory_space<vmem>>, %arg2: memref<640x128xbf16, #tpu.memory_space<vmem>>, %arg3: memref<1x128xf32, #tpu.memory_space<vmem>>, %arg4: memref<8x128xf32, #tpu.memory_space<vmem>>) attributes {dimension_semantics = [#tpu.dimension_semantics<parallel>], iteration_bounds = array<i64: 1>, scalar_prefetch = 0 : i64, scratch_operands = 0 : i64, tpu.core_type = #tpu.core_type<tc>, window_params = [{transform_indices = @transform_0, window_bounds = array<i64: 8, 640>}, {pipeline_mode = #tpu.pipeline_mode<synchronous>, transform_indices = @transform_1, window_bounds = array<i64: 640, 128>}, {pipeline_mode = #tpu.pipeline_mode<synchronous>, transform_indices = @transform_2, window_bounds = array<i64: 1, 128>}, {transform_indices = @transform_3, window_bounds = array<i64: 8, 128>}]} {
    %c0 = arith.constant 0 : index
    %c0_0 = arith.constant 0 : index
    %0 = vector.load %arg1[%c0, %c0_0] : memref<8x640xbf16, #tpu.memory_space<vmem>>, vector<8x640xbf16>
    %c0_1 = arith.constant 0 : index
    %c0_2 = arith.constant 0 : index
    %1 = vector.load %arg2[%c0_1, %c0_2] : memref<640x128xbf16, #tpu.memory_space<vmem>>, vector<640x128xbf16>
    %cst = arith.constant dense<0.000000e+00> : vector<8x128xf32>
    %2 = tpu.matmul %0, %1, %cst {dimension_numbers = #tpu.dot_dimension_numbers<[1], [0], [0], [1], [0, 0, 1, 1], [], []>} : vector<8x640xbf16>, vector<640x128xbf16>, vector<8x128xf32> -> vector<8x128xf32>
    %c0_3 = arith.constant 0 : index
    %c0_4 = arith.constant 0 : index
    %3 = vector.load %arg3[%c0_3, %c0_4] : memref<1x128xf32, #tpu.memory_space<vmem>>, vector<1x128xf32>
    %4 = vector.broadcast %3 : vector<1x128xf32> to vector<8x128xf32>
    %5 = arith.addf %2, %4 : vector<8x128xf32>
    %cst_5 = arith.constant 0.000000e+00 : f32
    %6 = vector.broadcast %cst_5 : f32 to vector<8x128xf32>
    %7 = arith.maximumf %5, %6 : vector<8x128xf32>
    %c0_6 = arith.constant 0 : index
    %c0_7 = arith.constant 0 : index
    %8 = vector.load %arg4[%c0_6, %c0_7] : memref<8x128xf32, #tpu.memory_space<vmem>>, vector<8x128xf32>
    tpu.vector_store %arg4[%c0_6, %c0_7], %7 {strides = array<i32>} : memref<8x128xf32, #tpu.memory_space<vmem>>, vector<8x128xf32>,
    return
  }
  func.func @transform_0(%arg0: i32) -> (i32, i32) {
    %c0_i32 = arith.constant 0 : i32
    %c0_i32_0 = arith.constant 0 : i32
    return %arg0, %c0_i32 : i32, i32
  }
  func.func @transform_1(%arg0: i32) -> (i32, i32) {
    %c0_i32 = arith.constant 0 : i32
    %c0_i32_0 = arith.constant 0 : i32
    %c0_i32_1 = arith.constant 0 : i32
    return %c0_i32, %c0_i32_0 : i32, i32
  }
  func.func @transform_2(%arg0: i32) -> (i32, i32) {
    %c0_i32 = arith.constant 0 : i32
    %c0_i32_0 = arith.constant 0 : i32
    %c0_i32_1 = arith.constant 0 : i32
    return %c0_i32, %c0_i32_0 : i32, i32
  }
  func.func @transform_3(%arg0: i32) -> (i32, i32) {
    %c0_i32 = arith.constant 0 : i32
    %c0_i32_0 = arith.constant 0 : i32
    return %arg0, %c0_i32 : i32, i32
  }
}

module attributes {stable_mosaic.version = 11 : i64} {
  func.func @_fused_mlp_kernel(%arg0: i32, %arg1: memref<8x128xbf16, #tpu.memory_space<vmem>>, %arg2: memref<128x128xbf16, #tpu.memory_space<vmem>>, %arg3: memref<1x128xf32, #tpu.memory_space<vmem>>, %arg4: memref<128x256xbf16, #tpu.memory_space<vmem>>, %arg5: memref<1x256xf32, #tpu.memory_space<vmem>>, %arg6: memref<256x128xbf16, #tpu.memory_space<vmem>>, %arg7: memref<1x128xf32, #tpu.memory_space<vmem>>, %arg8: memref<8x128xf32, #tpu.memory_space<vmem>>) attributes {dimension_semantics = [#tpu.dimension_semantics<parallel>], iteration_bounds = array<i64: 1>, scalar_prefetch = 0 : i64, scratch_operands = 0 : i64, tpu.core_type = #tpu.core_type<tc>, window_params = [{transform_indices = @transform_0, window_bounds = array<i64: 8, 128>}, {pipeline_mode = #tpu.pipeline_mode<synchronous>, transform_indices = @transform_1, window_bounds = array<i64: 128, 128>}, {pipeline_mode = #tpu.pipeline_mode<synchronous>, transform_indices = @transform_2, window_bounds = array<i64: 1, 128>}, {pipeline_mode = #tpu.pipeline_mode<synchronous>, transform_indices = @transform_3, window_bounds = array<i64: 128, 256>}, {pipeline_mode = #tpu.pipeline_mode<synchronous>, transform_indices = @transform_4, window_bounds = array<i64: 1, 256>}, {pipeline_mode = #tpu.pipeline_mode<synchronous>, transform_indices = @transform_5, window_bounds = array<i64: 256, 128>}, {pipeline_mode = #tpu.pipeline_mode<synchronous>, transform_indices = @transform_6, window_bounds = array<i64: 1, 128>}, {transform_indices = @transform_7, window_bounds = array<i64: 8, 128>}]} {
    %c0 = arith.constant 0 : index
    %c0_0 = arith.constant 0 : index
    %0 = vector.load %arg1[%c0, %c0_0] : memref<8x128xbf16, #tpu.memory_space<vmem>>, vector<8x128xbf16>
    %c0_1 = arith.constant 0 : index
    %c0_2 = arith.constant 0 : index
    %1 = vector.load %arg2[%c0_1, %c0_2] : memref<128x128xbf16, #tpu.memory_space<vmem>>, vector<128x128xbf16>
    %cst = arith.constant dense<0.000000e+00> : vector<8x128xf32>
    %2 = tpu.matmul %0, %1, %cst {dimension_numbers = #tpu.dot_dimension_numbers<[1], [0], [0], [1], [0, 0, 1, 1], [], []>} : vector<8x128xbf16>, vector<128x128xbf16>, vector<8x128xf32> -> vector<8x128xf32>
    %c0_3 = arith.constant 0 : index
    %c0_4 = arith.constant 0 : index
    %3 = vector.load %arg3[%c0_3, %c0_4] : memref<1x128xf32, #tpu.memory_space<vmem>>, vector<1x128xf32>
    %4 = vector.broadcast %3 : vector<1x128xf32> to vector<8x128xf32>
    %5 = arith.addf %2, %4 : vector<8x128xf32>
    %cst_5 = arith.constant 0.000000e+00 : f32
    %6 = vector.broadcast %cst_5 : f32 to vector<8x128xf32>
    %7 = arith.maximumf %5, %6 : vector<8x128xf32>
    %8 = arith.truncf %7 : vector<8x128xf32> to vector<8x128xbf16>
    %c0_6 = arith.constant 0 : index
    %c0_7 = arith.constant 0 : index
    %9 = vector.load %arg4[%c0_6, %c0_7] : memref<128x256xbf16, #tpu.memory_space<vmem>>, vector<128x256xbf16>
    %cst_8 = arith.constant dense<0.000000e+00> : vector<8x256xf32>
    %10 = tpu.matmul %8, %9, %cst_8 {dimension_numbers = #tpu.dot_dimension_numbers<[1], [0], [0], [1], [0, 0, 1, 1], [], []>} : vector<8x128xbf16>, vector<128x256xbf16>, vector<8x256xf32> -> vector<8x256xf32>
    %c0_9 = arith.constant 0 : index
    %c0_10 = arith.constant 0 : index
    %11 = vector.load %arg5[%c0_9, %c0_10] : memref<1x256xf32, #tpu.memory_space<vmem>>, vector<1x256xf32>
    %12 = vector.broadcast %11 : vector<1x256xf32> to vector<8x256xf32>
    %13 = arith.addf %10, %12 : vector<8x256xf32>
    %cst_11 = arith.constant 0.000000e+00 : f32
    %14 = vector.broadcast %cst_11 : f32 to vector<8x256xf32>
    %15 = arith.maximumf %13, %14 : vector<8x256xf32>
    %16 = arith.truncf %15 : vector<8x256xf32> to vector<8x256xbf16>
    %c0_12 = arith.constant 0 : index
    %c0_13 = arith.constant 0 : index
    %17 = vector.load %arg6[%c0_12, %c0_13] : memref<256x128xbf16, #tpu.memory_space<vmem>>, vector<256x128xbf16>
    %cst_14 = arith.constant dense<0.000000e+00> : vector<8x128xf32>
    %18 = tpu.matmul %16, %17, %cst_14 {dimension_numbers = #tpu.dot_dimension_numbers<[1], [0], [0], [1], [0, 0, 1, 1], [], []>} : vector<8x256xbf16>, vector<256x128xbf16>, vector<8x128xf32> -> vector<8x128xf32>
    %c0_15 = arith.constant 0 : index
    %c0_16 = arith.constant 0 : index
    %19 = vector.load %arg7[%c0_15, %c0_16] : memref<1x128xf32, #tpu.memory_space<vmem>>, vector<1x128xf32>
    %20 = vector.broadcast %19 : vector<1x128xf32> to vector<8x128xf32>
    %21 = arith.addf %18, %20 : vector<8x128xf32>
    %c0_17 = arith.constant 0 : index
    %c0_18 = arith.constant 0 : index
    %22 = vector.load %arg8[%c0_17, %c0_18] : memref<8x128xf32, #tpu.memory_space<vmem>>, vector<8x128xf32>
    tpu.vector_store %arg8[%c0_17, %c0_18], %21 {strides = array<i32>} : memref<8x128xf32, #tpu.memory_space<vmem>>, vector<8x128xf32>,
    return
  }
  func.func @transform_0(%arg0: i32) -> (i32, i32) {
    %c0_i32 = arith.constant 0 : i32
    %c0_i32_0 = arith.constant 0 : i32
    return %arg0, %c0_i32 : i32, i32
  }
  func.func @transform_1(%arg0: i32) -> (i32, i32) {
    %c0_i32 = arith.constant 0 : i32
    %c0_i32_0 = arith.constant 0 : i32
    %c0_i32_1 = arith.constant 0 : i32
    return %c0_i32, %c0_i32_0 : i32, i32
  }
  func.func @transform_2(%arg0: i32) -> (i32, i32) {
    %c0_i32 = arith.constant 0 : i32
    %c0_i32_0 = arith.constant 0 : i32
    %c0_i32_1 = arith.constant 0 : i32
    return %c0_i32, %c0_i32_0 : i32, i32
  }
  func.func @transform_3(%arg0: i32) -> (i32, i32) {
    %c0_i32 = arith.constant 0 : i32
    %c0_i32_0 = arith.constant 0 : i32
    %c0_i32_1 = arith.constant 0 : i32
    return %c0_i32, %c0_i32_0 : i32, i32
  }
  func.func @transform_4(%arg0: i32) -> (i32, i32) {
    %c0_i32 = arith.constant 0 : i32
    %c0_i32_0 = arith.constant 0 : i32
    %c0_i32_1 = arith.constant 0 : i32
    return %c0_i32, %c0_i32_0 : i32, i32
  }
  func.func @transform_5(%arg0: i32) -> (i32, i32) {
    %c0_i32 = arith.constant 0 : i32
    %c0_i32_0 = arith.constant 0 : i32
    %c0_i32_1 = arith.constant 0 : i32
    return %c0_i32, %c0_i32_0 : i32, i32
  }
  func.func @transform_6(%arg0: i32) -> (i32, i32) {
    %c0_i32 = arith.constant 0 : i32
    %c0_i32_0 = arith.constant 0 : i32
    %c0_i32_1 = arith.constant 0 : i32
    return %c0_i32, %c0_i32_0 : i32, i32
  }
  func.func @transform_7(%arg0: i32) -> (i32, i32) {
    %c0_i32 = arith.constant 0 : i32
    %c0_i32_0 = arith.constant 0 : i32
    return %arg0, %c0_i32 : i32, i32
  }
}

</mosaic_0001>

<llo_original>
// kernel: conv_dqn_forward.4
$region0: #{conv_dqn_forward.4}
  #allocation0 [shape = 'u32[]', space=smem, size = 0x4, offset = 0x4, fixed_abs, tag = 'smem constant byte address 0x4 - core index']
  #allocation1 [shape = 'u32[144,128]{1,0:T(1,128)}', space=vmem, size = 0x12000, scoped, tag = 'internal scratch']
  %s0 = inlined_call_operand.vmem [shape: bf16[128,256], index: 0, kind: input, shape index: {}]
  %s1 = inlined_call_operand.vmem [shape: bf16[256,128], index: 1, kind: input, shape index: {}]
  %s2 = inlined_call_operand.vmem [shape: f32[1,128], index: 2, kind: input, shape index: {}]
  %s3 = inlined_call_operand.vmem [shape: f32[128,128], index: 3, kind: output, shape index: {}]
  %s4 = sld [smem:[#allocation0]]
  $region22: #{conv_dqn_forward.4} parent=0
    _
  %s6 = ssub.s32 1, %s4
  %s7 = scalar_select 0, %s6, %s4
  // Predicated region
  $region2: #{conv_dqn_forward.4} parent=0 // pred_check
    _
  $region3: #{conv_dqn_forward.4} parent=0 // pred_check_branch
    %9 = sbr.rel (0) target = $region5
  $region4: #{conv_dqn_forward.4} parent=0 // pred_region
    _
  $region5: #{conv_dqn_forward.4} parent=0 // pred_fallthru
    _
  // Predicated region
  $region6: #{conv_dqn_forward.4} parent=0 // pred_check
    _
  $region7: #{conv_dqn_forward.4} parent=0 // pred_check_branch
    %11 = sbr.rel (0) target = $region9
  $region8: #{conv_dqn_forward.4} parent=0 // pred_region
    _
  $region9: #{conv_dqn_forward.4} parent=0 // pred_fallthru
    _
  // Predicated region
  $region10: #{conv_dqn_forward.4} parent=0 // pred_check
    _
  $region11: #{conv_dqn_forward.4} parent=0 // pred_check_branch
    %13 = sbr.rel (0) target = $region13
  $region12: #{conv_dqn_forward.4} parent=0 // pred_region
    _
  $region13: #{conv_dqn_forward.4} parent=0 // pred_fallthru
    _
  %v15 = vld [vmem:[%s0] sm:$0xff]
  %v16 = vld [vmem:[%s0 + $0x8] sm:$0xff]
  %v17 = vld [vmem:[%s0 + $0x10] sm:$0xff]
  %v18 = vld [vmem:[%s0 + $0x18] sm:$0xff]
  %v19 = vld [vmem:[%s0 + $0x20] sm:$0xff]
  %v20 = vld [vmem:[%s0 + $0x28] sm:$0xff]
  %v21 = vld [vmem:[%s0 + $0x30] sm:$0xff]
  %v22 = vld [vmem:[%s0 + $0x38] sm:$0xff]
  %v23 = vld [vmem:[%s0 + $0x40] sm:$0xff]
  %v24 = vld [vmem:[%s0 + $0x48] sm:$0xff]
  %v25 = vld [vmem:[%s0 + $0x50] sm:$0xff]
  %v26 = vld [vmem:[%s0 + $0x58] sm:$0xff]
  %v27 = vld [vmem:[%s0 + $0x60] sm:$0xff]
  %v28 = vld [vmem:[%s0 + $0x68] sm:$0xff]
  %v29 = vld [vmem:[%s0 + $0x70] sm:$0xff]
  %v30 = vld [vmem:[%s0 + $0x78] sm:$0xff]
  %v31 = vld [vmem:[%s1] sm:$0xf]
  %v32 = vld [vmem:[%s1 + $0x4] sm:$0xf]
  %v33 = vld [vmem:[%s1 + $0x8] sm:$0xf]
  %v34 = vld [vmem:[%s1 + $0xc] sm:$0xf]
  %v35 = vld [vmem:[%s1 + $0x10] sm:$0xf]
  %v36 = vld [vmem:[%s1 + $0x14] sm:$0xf]
  %v37 = vld [vmem:[%s1 + $0x18] sm:$0xf]
  %v38 = vld [vmem:[%s1 + $0x1c] sm:$0xf]
  %v39 = vld [vmem:[%s1 + $0x20] sm:$0xf]
  %v40 = vld [vmem:[%s1 + $0x24] sm:$0xf]
  %v41 = vld [vmem:[%s1 + $0x28] sm:$0xf]
  %v42 = vld [vmem:[%s1 + $0x2c] sm:$0xf]
  %v43 = vld [vmem:[%s1 + $0x30] sm:$0xf]
  %v44 = vld [vmem:[%s1 + $0x34] sm:$0xf]
  %v45 = vld [vmem:[%s1 + $0x38] sm:$0xf]
  %v46 = vld [vmem:[%s1 + $0x3c] sm:$0xf]
  %v47 = vld [vmem:[%s1 + $0x40] sm:$0xf]
  %v48 = vld [vmem:[%s1 + $0x44] sm:$0xf]
  %v49 = vld [vmem:[%s1 + $0x48] sm:$0xf]
  %v50 = vld [vmem:[%s1 + $0x4c] sm:$0xf]
  %v51 = vld [vmem:[%s1 + $0x50] sm:$0xf]
  %v52 = vld [vmem:[%s1 + $0x54] sm:$0xf]
  %v53 = vld [vmem:[%s1 + $0x58] sm:$0xf]
  %v54 = vld [vmem:[%s1 + $0x5c] sm:$0xf]
  %v55 = vld [vmem:[%s1 + $0x60] sm:$0xf]
  %v56 = vld [vmem:[%s1 + $0x64] sm:$0xf]
  %v57 = vld [vmem:[%s1 + $0x68] sm:$0xf]
  %v58 = vld [vmem:[%s1 + $0x6c] sm:$0xf]
  %v59 = vld [vmem:[%s1 + $0x70] sm:$0xf]
  %v60 = vld [vmem:[%s1 + $0x74] sm:$0xf]
  %v61 = vld [vmem:[%s1 + $0x78] sm:$0xf]
  %v62 = vld [vmem:[%s1 + $0x7c] sm:$0xf]
  %v63 = vld [vmem:[%s2] sm:$0x1]
  %v65 = vlaneseq
  %v66 = vshrl.u32 %v65, 7
  %v67 = vsub.s32 0, %v66
  %v68 = vrot.slane %v63, %v67
  %v86 = vunpack.c.l.b16 %v15
  %v87 = vunpack.c.h.b16 %v15
  %v88 = vunpack.c.l.b16 %v16
  %v89 = vunpack.c.h.b16 %v16
  %v90 = vunpack.c.l.b16 %v17
  %v91 = vunpack.c.h.b16 %v17
  %v92 = vunpack.c.l.b16 %v18
  %v93 = vunpack.c.h.b16 %v18
  %v94 = vunpack.c.l.b16 %v19
  %v95 = vunpack.c.h.b16 %v19
  %v96 = vunpack.c.l.b16 %v20
  %v97 = vunpack.c.h.b16 %v20
  %v98 = vunpack.c.l.b16 %v21
  %v99 = vunpack.c.h.b16 %v21
  %v100 = vunpack.c.l.b16 %v22
  %v101 = vunpack.c.h.b16 %v22
  %v102 = vunpack.c.l.b16 %v23
  %v103 = vunpack.c.h.b16 %v23
  %v104 = vunpack.c.l.b16 %v24
  %v105 = vunpack.c.h.b16 %v24
  %v106 = vunpack.c.l.b16 %v25
  %v107 = vunpack.c.h.b16 %v25
  %v108 = vunpack.c.l.b16 %v26
  %v109 = vunpack.c.h.b16 %v26
  %v110 = vunpack.c.l.b16 %v27
  %v111 = vunpack.c.h.b16 %v27
  %v112 = vunpack.c.l.b16 %v28
  %v113 = vunpack.c.h.b16 %v28
  %v114 = vunpack.c.l.b16 %v29
  %v115 = vunpack.c.h.b16 %v29
  %v116 = vunpack.c.l.b16 %v30
  %v117 = vunpack.c.h.b16 %v30
  %v118 = vpack.c.b16 %v88, %v86
  %v119 = vpack.c.b16 %v89, %v87
  %v120 = vpack.c.b16 %v92, %v90
  %v121 = vpack.c.b16 %v93, %v91
  %v122 = vpack.c.b16 %v96, %v94
  %v123 = vpack.c.b16 %v97, %v95
  %v124 = vpack.c.b16 %v100, %v98
  %v125 = vpack.c.b16 %v101, %v99
  %v126 = vpack.c.b16 %v104, %v102
  %v127 = vpack.c.b16 %v105, %v103
  %v128 = vpack.c.b16 %v108, %v106
  %v129 = vpack.c.b16 %v109, %v107
  %v130 = vpack.c.b16 %v112, %v110
  %v131 = vpack.c.b16 %v113, %v111
  %v132 = vpack.c.b16 %v116, %v114
  %v133 = vpack.c.b16 %v117, %v115
  %v182 = vunpack.c.l.b16 %v31
  %v183 = vunpack.c.l.b16 %v32
  %v184 = vunpack.c.l.b16 %v33
  %v185 = vunpack.c.l.b16 %v34
  %v186 = vunpack.c.l.b16 %v35
  %v187 = vunpack.c.l.b16 %v36
  %v188 = vunpack.c.l.b16 %v37
  %v189 = vunpack.c.l.b16 %v38
  %v190 = vunpack.c.l.b16 %v39
  %v191 = vunpack.c.l.b16 %v40
  %v192 = vunpack.c.l.b16 %v41
  %v193 = vunpack.c.l.b16 %v42
  %v194 = vunpack.c.l.b16 %v43
  %v195 = vunpack.c.l.b16 %v44
  %v196 = vunpack.c.l.b16 %v45
  %v197 = vunpack.c.l.b16 %v46
  %v198 = vunpack.c.l.b16 %v47
  %v199 = vunpack.c.l.b16 %v48
  %v200 = vunpack.c.l.b16 %v49
  %v201 = vunpack.c.l.b16 %v50
  %v202 = vunpack.c.l.b16 %v51
  %v203 = vunpack.c.l.b16 %v52
  %v204 = vunpack.c.l.b16 %v53
  %v205 = vunpack.c.l.b16 %v54
  %v206 = vunpack.c.l.b16 %v55
  %v207 = vunpack.c.l.b16 %v56
  %v208 = vunpack.c.l.b16 %v57
  %v209 = vunpack.c.l.b16 %v58
  %v210 = vunpack.c.l.b16 %v59
  %v211 = vunpack.c.l.b16 %v60
  %v212 = vunpack.c.l.b16 %v61
  %v213 = vunpack.c.l.b16 %v62
  %v214 = vpack.c.b16 %v183, %v182
  %v215 = vpack.c.b16 %v185, %v184
  %v216 = vpack.c.b16 %v187, %v186
  %v217 = vpack.c.b16 %v189, %v188
  %v218 = vpack.c.b16 %v191, %v190
  %v219 = vpack.c.b16 %v193, %v192
  %v220 = vpack.c.b16 %v195, %v194
  %v221 = vpack.c.b16 %v197, %v196
  %v222 = vpack.c.b16 %v199, %v198
  %v223 = vpack.c.b16 %v201, %v200
  %v224 = vpack.c.b16 %v203, %v202
  %v225 = vpack.c.b16 %v205, %v204
  %v226 = vpack.c.b16 %v207, %v206
  %v227 = vpack.c.b16 %v209, %v208
  %v228 = vpack.c.b16 %v211, %v210
  %v229 = vpack.c.b16 %v213, %v212
  %246 = vmatprep.subr.bf16.mxu0 0
  %247 = vmatpush1.bf16.msra.mxu0 %v214
  %248 = vmatprep.subr.bf16.mxu0 0
  %249 = vmatpush1.bf16.msra.mxu0 %v215
  %250 = vmatprep.subr.bf16.mxu0 0
  %251 = vmatpush1.bf16.msra.mxu0 %v216
  %252 = vmatprep.subr.bf16.mxu0 0
  %253 = vmatpush1.bf16.msra.mxu0 %v217
  %254 = vmatprep.subr.bf16.mxu0 0
  %255 = vmatpush1.bf16.msra.mxu0 %v218
  %256 = vmatprep.subr.bf16.mxu0 0
  %257 = vmatpush1.bf16.msra.mxu0 %v219
  %258 = vmatprep.subr.bf16.mxu0 0
  %259 = vmatpush1.bf16.msra.mxu0 %v220
  %260 = vmatprep.subr.bf16.mxu0 0
  %261 = vmatpush1.bf16.msra.mxu0 %v221
  %262 = vmatprep.subr.bf16.mxu0 0
  %263 = vmatpush1.bf16.msra.mxu0 %v222
  %264 = vmatprep.subr.bf16.mxu0 0
  %265 = vmatpush1.bf16.msra.mxu0 %v223
  %266 = vmatprep.subr.bf16.mxu0 0
  %267 = vmatpush1.bf16.msra.mxu0 %v224
  %268 = vmatprep.subr.bf16.mxu0 0
  %269 = vmatpush1.bf16.msra.mxu0 %v225
  %270 = vmatprep.subr.bf16.mxu0 0
  %271 = vmatpush1.bf16.msra.mxu0 %v226
  %272 = vmatprep.subr.bf16.mxu0 0
  %273 = vmatpush1.bf16.msra.mxu0 %v227
  %274 = vmatprep.subr.bf16.mxu0 0
  %275 = vmatpush1.bf16.msra.mxu0 %v228
  %276 = vmatprep.subr.bf16.mxu0 0
  %277 = vmatpush1.bf16.msra.mxu0 %v229
  %278 = vmatprep.mubr.bf16.mxu0 %v119
  %279 = vmatmul.mubr.bf16.gmra.mrb[0].mxu0 %v118
  %v280 = vpop.f32.mrb[0].mxu0
  %v281 = vadd.f32 %v68, %v280
  %v282 = vpop.f32.mrb[0].mxu0
  %v283 = vpop.f32.mrb[0].mxu0
  %v284 = vadd.f32 %v68, %v283
  %v285 = vpop.f32.mrb[0].mxu0
  %286 = vmatprep.mubr.bf16.mxu0 %v121
  %287 = vmatmul.mubr.bf16.gmra.mrb[0].mxu0 %v120
  %v288 = vpop.f32.mrb[0].mxu0
  %v289 = vadd.f32 %v68, %v288
  %v290 = vpop.f32.mrb[0].mxu0
  %v291 = vpop.f32.mrb[0].mxu0
  %v292 = vadd.f32 %v68, %v291
  %v293 = vpop.f32.mrb[0].mxu0
  %294 = vmatprep.mubr.bf16.mxu0 %v123
  %295 = vmatmul.mubr.bf16.gmra.mrb[0].mxu0 %v122
  %v296 = vpop.f32.mrb[0].mxu0
  %v297 = vadd.f32 %v68, %v296
  %v298 = vpop.f32.mrb[0].mxu0
  %v299 = vpop.f32.mrb[0].mxu0
  %v300 = vadd.f32 %v68, %v299
  %v301 = vpop.f32.mrb[0].mxu0
  %302 = vmatprep.mubr.bf16.mxu0 %v125
  %303 = vmatmul.mubr.bf16.gmra.mrb[0].mxu0 %v124
  %v304 = vpop.f32.mrb[0].mxu0
  %v305 = vadd.f32 %v68, %v304
  %v306 = vpop.f32.mrb[0].mxu0
  %v307 = vpop.f32.mrb[0].mxu0
  %v308 = vadd.f32 %v68, %v307
  %v309 = vpop.f32.mrb[0].mxu0
  %310 = vmatprep.mubr.bf16.mxu0 %v127
  %311 = vmatmul.mubr.bf16.gmra.mrb[0].mxu0 %v126
  %v312 = vpop.f32.mrb[0].mxu0
  %v313 = vadd.f32 %v68, %v312
  %v314 = vpop.f32.mrb[0].mxu0
  %v315 = vpop.f32.mrb[0].mxu0
  %v316 = vadd.f32 %v68, %v315
  %v317 = vpop.f32.mrb[0].mxu0
  %318 = vmatprep.mubr.bf16.mxu0 %v129
  %319 = vmatmul.mubr.bf16.gmra.mrb[0].mxu0 %v128
  %v320 = vpop.f32.mrb[0].mxu0
  %v321 = vadd.f32 %v68, %v320
  %v322 = vpop.f32.mrb[0].mxu0
  %v323 = vpop.f32.mrb[0].mxu0
  %v324 = vadd.f32 %v68, %v323
  %v325 = vpop.f32.mrb[0].mxu0
  %326 = vmatprep.mubr.bf16.mxu0 %v131
  %327 = vmatmul.mubr.bf16.gmra.mrb[0].mxu0 %v130
  %v328 = vpop.f32.mrb[0].mxu0
  %v329 = vadd.f32 %v68, %v328
  %v330 = vpop.f32.mrb[0].mxu0
  %v331 = vpop.f32.mrb[0].mxu0
  %v332 = vadd.f32 %v68, %v331
  %v333 = vpop.f32.mrb[0].mxu0
  %334 = vmatprep.mubr.bf16.mxu0 %v133
  %335 = vmatmul.mubr.bf16.gmra.mrb[0].mxu0 %v132
  %v336 = vpop.f32.mrb[0].mxu0
  %v337 = vadd.f32 %v68, %v336
  %v338 = vpop.f32.mrb[0].mxu0
  %v339 = vpop.f32.mrb[0].mxu0
  %v340 = vadd.f32 %v68, %v339
  %v341 = vpop.f32.mrb[0].mxu0
  %342 = vdwg.mxu0
  %v343 = vmax.f32 %v281, 0.0
  %v344 = vmax.f32 %v284, 0.0
  %v345 = vmax.f32 %v289, 0.0
  %v346 = vmax.f32 %v292, 0.0
  %v347 = vmax.f32 %v297, 0.0
  %v348 = vmax.f32 %v300, 0.0
  %v349 = vmax.f32 %v305, 0.0
  %v350 = vmax.f32 %v308, 0.0
  %v351 = vmax.f32 %v313, 0.0
  %v352 = vmax.f32 %v316, 0.0
  %v353 = vmax.f32 %v321, 0.0
  %v354 = vmax.f32 %v324, 0.0
  %v355 = vmax.f32 %v329, 0.0
  %v356 = vmax.f32 %v332, 0.0
  %v357 = vmax.f32 %v337, 0.0
  %v358 = vmax.f32 %v340, 0.0
  %359 = vst [vmem:[%s3] sm:$0xff] %v343
  %360 = vst [vmem:[%s3 + $0x8] sm:$0xff] %v344
  %361 = vst [vmem:[%s3 + $0x10] sm:$0xff] %v345
  %362 = vst [vmem:[%s3 + $0x18] sm:$0xff] %v346
  %363 = vst [vmem:[%s3 + $0x20] sm:$0xff] %v347
  %364 = vst [vmem:[%s3 + $0x28] sm:$0xff] %v348
  %365 = vst [vmem:[%s3 + $0x30] sm:$0xff] %v349
  %366 = vst [vmem:[%s3 + $0x38] sm:$0xff] %v350
  %367 = vst [vmem:[%s3 + $0x40] sm:$0xff] %v351
  %368 = vst [vmem:[%s3 + $0x48] sm:$0xff] %v352
  %369 = vst [vmem:[%s3 + $0x50] sm:$0xff] %v353
  %370 = vst [vmem:[%s3 + $0x58] sm:$0xff] %v354
  %371 = vst [vmem:[%s3 + $0x60] sm:$0xff] %v355
  %372 = vst [vmem:[%s3 + $0x68] sm:$0xff] %v356
  %373 = vst [vmem:[%s3 + $0x70] sm:$0xff] %v357
  %374 = vst [vmem:[%s3 + $0x78] sm:$0xff] %v358
  // Predicated region
  $region14: #{conv_dqn_forward.4} parent=0 // pred_check
    _
  $region15: #{conv_dqn_forward.4} parent=0 // pred_check_branch
    %376 = sbr.rel (0) target = $region17
  $region16: #{conv_dqn_forward.4} parent=0 // pred_region
    _
  $region17: #{conv_dqn_forward.4} parent=0 // pred_fallthru
    _
  // Predicated region
  $region18: #{conv_dqn_forward.4} parent=0 // pred_check
    _
  $region19: #{conv_dqn_forward.4} parent=0 // pred_check_branch
    %378 = sbr.rel (0) target = $region21
  $region20: #{conv_dqn_forward.4} parent=0 // pred_region
    _
  $region21: #{conv_dqn_forward.4} parent=0 // pred_fallthru
    _

// kernel: conv_dqn_forward.5
$region0: #{conv_dqn_forward.5}
  #allocation0 [shape = 'u32[]', space=smem, size = 0x4, offset = 0x4, fixed_abs, tag = 'smem constant byte address 0x4 - core index']
  #allocation1 [shape = 'u32[144,128]{1,0:T(1,128)}', space=vmem, size = 0x12000, scoped, tag = 'internal scratch']
  %s0 = inlined_call_operand.vmem [shape: bf16[24,512], index: 0, kind: input, shape index: {}]
  %s1 = inlined_call_operand.vmem [shape: bf16[512,128], index: 1, kind: input, shape index: {}]
  %s2 = inlined_call_operand.vmem [shape: f32[1,128], index: 2, kind: input, shape index: {}]
  %s3 = inlined_call_operand.vmem [shape: f32[24,128], index: 3, kind: output, shape index: {}]
  %s4 = sld [smem:[#allocation0]]
  $region22: #{conv_dqn_forward.5} parent=0
    _
  %s6 = ssub.s32 1, %s4
  %s7 = scalar_select 0, %s6, %s4
  // Predicated region
  $region2: #{conv_dqn_forward.5} parent=0 // pred_check
    _
  $region3: #{conv_dqn_forward.5} parent=0 // pred_check_branch
    %9 = sbr.rel (0) target = $region5
  $region4: #{conv_dqn_forward.5} parent=0 // pred_region
    _
  $region5: #{conv_dqn_forward.5} parent=0 // pred_fallthru
    _
  // Predicated region
  $region6: #{conv_dqn_forward.5} parent=0 // pred_check
    _
  $region7: #{conv_dqn_forward.5} parent=0 // pred_check_branch
    %11 = sbr.rel (0) target = $region9
  $region8: #{conv_dqn_forward.5} parent=0 // pred_region
    _
  $region9: #{conv_dqn_forward.5} parent=0 // pred_fallthru
    _
  // Predicated region
  $region10: #{conv_dqn_forward.5} parent=0 // pred_check
    _
  $region11: #{conv_dqn_forward.5} parent=0 // pred_check_branch
    %13 = sbr.rel (0) target = $region13
  $region12: #{conv_dqn_forward.5} parent=0 // pred_region
    _
  $region13: #{conv_dqn_forward.5} parent=0 // pred_fallthru
    _
  %v15 = vld [vmem:[%s0] sm:$0xff]
  %v16 = vld [vmem:[%s0 + $0x8] sm:$0xff]
  %v17 = vld [vmem:[%s0 + $0x10] sm:$0xff]
  %v18 = vld [vmem:[%s0 + $0x18] sm:$0xff]
  %v19 = vld [vmem:[%s0 + $0x20] sm:$0xff]
  %v20 = vld [vmem:[%s0 + $0x28] sm:$0xff]
  %v21 = vld [vmem:[%s1] sm:$0xf]
  %v22 = vld [vmem:[%s1 + $0x4] sm:$0xf]
  %v23 = vld [vmem:[%s1 + $0x8] sm:$0xf]
  %v24 = vld [vmem:[%s1 + $0xc] sm:$0xf]
  %v25 = vld [vmem:[%s1 + $0x10] sm:$0xf]
  %v26 = vld [vmem:[%s1 + $0x14] sm:$0xf]
  %v27 = vld [vmem:[%s1 + $0x18] sm:$0xf]
  %v28 = vld [vmem:[%s1 + $0x1c] sm:$0xf]
  %v29 = vld [vmem:[%s1 + $0x20] sm:$0xf]
  %v30 = vld [vmem:[%s1 + $0x24] sm:$0xf]
  %v31 = vld [vmem:[%s1 + $0x28] sm:$0xf]
  %v32 = vld [vmem:[%s1 + $0x2c] sm:$0xf]
  %v33 = vld [vmem:[%s1 + $0x30] sm:$0xf]
  %v34 = vld [vmem:[%s1 + $0x34] sm:$0xf]
  %v35 = vld [vmem:[%s1 + $0x38] sm:$0xf]
  %v36 = vld [vmem:[%s1 + $0x3c] sm:$0xf]
  %v37 = vld [vmem:[%s1 + $0x40] sm:$0xf]
  %v38 = vld [vmem:[%s1 + $0x44] sm:$0xf]
  %v39 = vld [vmem:[%s1 + $0x48] sm:$0xf]
  %v40 = vld [vmem:[%s1 + $0x4c] sm:$0xf]
  %v41 = vld [vmem:[%s1 + $0x50] sm:$0xf]
  %v42 = vld [vmem:[%s1 + $0x54] sm:$0xf]
  %v43 = vld [vmem:[%s1 + $0x58] sm:$0xf]
  %v44 = vld [vmem:[%s1 + $0x5c] sm:$0xf]
  %v45 = vld [vmem:[%s1 + $0x60] sm:$0xf]
  %v46 = vld [vmem:[%s1 + $0x64] sm:$0xf]
  %v47 = vld [vmem:[%s1 + $0x68] sm:$0xf]
  %v48 = vld [vmem:[%s1 + $0x6c] sm:$0xf]
  %v49 = vld [vmem:[%s1 + $0x70] sm:$0xf]
  %v50 = vld [vmem:[%s1 + $0x74] sm:$0xf]
  %v51 = vld [vmem:[%s1 + $0x78] sm:$0xf]
  %v52 = vld [vmem:[%s1 + $0x7c] sm:$0xf]
  %v53 = vld [vmem:[%s1 + $0x80] sm:$0xf]
  %v54 = vld [vmem:[%s1 + $0x84] sm:$0xf]
  %v55 = vld [vmem:[%s1 + $0x88] sm:$0xf]
  %v56 = vld [vmem:[%s1 + $0x8c] sm:$0xf]
  %v57 = vld [vmem:[%s1 + $0x90] sm:$0xf]
  %v58 = vld [vmem:[%s1 + $0x94] sm:$0xf]
  %v59 = vld [vmem:[%s1 + $0x98] sm:$0xf]
  %v60 = vld [vmem:[%s1 + $0x9c] sm:$0xf]
  %v61 = vld [vmem:[%s1 + $0xa0] sm:$0xf]
  %v62 = vld [vmem:[%s1 + $0xa4] sm:$0xf]
  %v63 = vld [vmem:[%s1 + $0xa8] sm:$0xf]
  %v64 = vld [vmem:[%s1 + $0xac] sm:$0xf]
  %v65 = vld [vmem:[%s1 + $0xb0] sm:$0xf]
  %v66 = vld [vmem:[%s1 + $0xb4] sm:$0xf]
  %v67 = vld [vmem:[%s1 + $0xb8] sm:$0xf]
  %v68 = vld [vmem:[%s1 + $0xbc] sm:$0xf]
  %v69 = vld [vmem:[%s1 + $0xc0] sm:$0xf]
  %v70 = vld [vmem:[%s1 + $0xc4] sm:$0xf]
  %v71 = vld [vmem:[%s1 + $0xc8] sm:$0xf]
  %v72 = vld [vmem:[%s1 + $0xcc] sm:$0xf]
  %v73 = vld [vmem:[%s1 + $0xd0] sm:$0xf]
  %v74 = vld [vmem:[%s1 + $0xd4] sm:$0xf]
  %v75 = vld [vmem:[%s1 + $0xd8] sm:$0xf]
  %v76 = vld [vmem:[%s1 + $0xdc] sm:$0xf]
  %v77 = vld [vmem:[%s1 + $0xe0] sm:$0xf]
  %v78 = vld [vmem:[%s1 + $0xe4] sm:$0xf]
  %v79 = vld [vmem:[%s1 + $0xe8] sm:$0xf]
  %v80 = vld [vmem:[%s1 + $0xec] sm:$0xf]
  %v81 = vld [vmem:[%s1 + $0xf0] sm:$0xf]
  %v82 = vld [vmem:[%s1 + $0xf4] sm:$0xf]
  %v83 = vld [vmem:[%s1 + $0xf8] sm:$0xf]
  %v84 = vld [vmem:[%s1 + $0xfc] sm:$0xf]
  %v85 = vld [vmem:[%s2] sm:$0x1]
  %v87 = vlaneseq
  %v88 = vshrl.u32 %v87, 7
  %v89 = vsub.s32 0, %v88
  %v90 = vrot.slane %v85, %v89
  %v98 = vunpack.c.l.b16 %v15
  %v99 = vunpack.c.h.b16 %v15
  %v100 = vunpack.c.l.b16 %v16
  %v101 = vunpack.c.h.b16 %v16
  %v102 = vunpack.c.l.b16 %v17
  %v103 = vunpack.c.h.b16 %v17
  %v104 = vunpack.c.l.b16 %v18
  %v105 = vunpack.c.h.b16 %v18
  %v106 = vunpack.c.l.b16 %v19
  %v107 = vunpack.c.h.b16 %v19
  %v108 = vunpack.c.l.b16 %v20
  %v109 = vunpack.c.h.b16 %v20
  %v110 = vpack.c.b16 %v102, %v98
  %v111 = vpack.c.b16 %v103, %v99
  %v112 = vpack.c.b16 %v104, %v100
  %v113 = vpack.c.b16 %v105, %v101
  %v114 = vpack.c.b16 %v106, %v106
  %v115 = vpack.c.b16 %v107, %v107
  %v116 = vpack.c.b16 %v108, %v108
  %v117 = vpack.c.b16 %v109, %v109
  %v190 = vunpack.c.l.b16 %v21
  %v191 = vunpack.c.l.b16 %v22
  %v192 = vunpack.c.l.b16 %v23
  %v193 = vunpack.c.l.b16 %v24
  %v194 = vunpack.c.l.b16 %v25
  %v195 = vunpack.c.l.b16 %v26
  %v196 = vunpack.c.l.b16 %v27
  %v197 = vunpack.c.l.b16 %v28
  %v198 = vunpack.c.l.b16 %v29
  %v199 = vunpack.c.l.b16 %v30
  %v200 = vunpack.c.l.b16 %v31
  %v201 = vunpack.c.l.b16 %v32
  %v202 = vunpack.c.l.b16 %v33
  %v203 = vunpack.c.l.b16 %v34
  %v204 = vunpack.c.l.b16 %v35
  %v205 = vunpack.c.l.b16 %v36
  %v206 = vunpack.c.l.b16 %v37
  %v207 = vunpack.c.l.b16 %v38
  %v208 = vunpack.c.l.b16 %v39
  %v209 = vunpack.c.l.b16 %v40
  %v210 = vunpack.c.l.b16 %v41
  %v211 = vunpack.c.l.b16 %v42
  %v212 = vunpack.c.l.b16 %v43
  %v213 = vunpack.c.l.b16 %v44
  %v214 = vunpack.c.l.b16 %v45
  %v215 = vunpack.c.l.b16 %v46
  %v216 = vunpack.c.l.b16 %v47
  %v217 = vunpack.c.l.b16 %v48
  %v218 = vunpack.c.l.b16 %v49
  %v219 = vunpack.c.l.b16 %v50
  %v220 = vunpack.c.l.b16 %v51
  %v221 = vunpack.c.l.b16 %v52
  %v222 = vunpack.c.l.b16 %v53
  %v223 = vunpack.c.l.b16 %v54
  %v224 = vunpack.c.l.b16 %v55
  %v225 = vunpack.c.l.b16 %v56
  %v226 = vunpack.c.l.b16 %v57
  %v227 = vunpack.c.l.b16 %v58
  %v228 = vunpack.c.l.b16 %v59
  %v229 = vunpack.c.l.b16 %v60
  %v230 = vunpack.c.l.b16 %v61
  %v231 = vunpack.c.l.b16 %v62
  %v232 = vunpack.c.l.b16 %v63
  %v233 = vunpack.c.l.b16 %v64
  %v234 = vunpack.c.l.b16 %v65
  %v235 = vunpack.c.l.b16 %v66
  %v236 = vunpack.c.l.b16 %v67
  %v237 = vunpack.c.l.b16 %v68
  %v238 = vunpack.c.l.b16 %v69
  %v239 = vunpack.c.l.b16 %v70
  %v240 = vunpack.c.l.b16 %v71
  %v241 = vunpack.c.l.b16 %v72
  %v242 = vunpack.c.l.b16 %v73
  %v243 = vunpack.c.l.b16 %v74
  %v244 = vunpack.c.l.b16 %v75
  %v245 = vunpack.c.l.b16 %v76
  %v246 = vunpack.c.l.b16 %v77
  %v247 = vunpack.c.l.b16 %v78
  %v248 = vunpack.c.l.b16 %v79
  %v249 = vunpack.c.l.b16 %v80
  %v250 = vunpack.c.l.b16 %v81
  %v251 = vunpack.c.l.b16 %v82
  %v252 = vunpack.c.l.b16 %v83
  %v253 = vunpack.c.l.b16 %v84
  %v254 = vpack.c.b16 %v191, %v190
  %v255 = vpack.c.b16 %v193, %v192
  %v256 = vpack.c.b16 %v195, %v194
  %v257 = vpack.c.b16 %v197, %v196
  %v258 = vpack.c.b16 %v199, %v198
  %v259 = vpack.c.b16 %v201, %v200
  %v260 = vpack.c.b16 %v203, %v202
  %v261 = vpack.c.b16 %v205, %v204
  %v262 = vpack.c.b16 %v207, %v206
  %v263 = vpack.c.b16 %v209, %v208
  %v264 = vpack.c.b16 %v211, %v210
  %v265 = vpack.c.b16 %v213, %v212
  %v266 = vpack.c.b16 %v215, %v214
  %v267 = vpack.c.b16 %v217, %v216
  %v268 = vpack.c.b16 %v219, %v218
  %v269 = vpack.c.b16 %v221, %v220
  %v270 = vpack.c.b16 %v223, %v222
  %v271 = vpack.c.b16 %v225, %v224
  %v272 = vpack.c.b16 %v227, %v226
  %v273 = vpack.c.b16 %v229, %v228
  %v274 = vpack.c.b16 %v231, %v230
  %v275 = vpack.c.b16 %v233, %v232
  %v276 = vpack.c.b16 %v235, %v234
  %v277 = vpack.c.b16 %v237, %v236
  %v278 = vpack.c.b16 %v239, %v238
  %v279 = vpack.c.b16 %v241, %v240
  %v280 = vpack.c.b16 %v243, %v242
  %v281 = vpack.c.b16 %v245, %v244
  %v282 = vpack.c.b16 %v247, %v246
  %v283 = vpack.c.b16 %v249, %v248
  %v284 = vpack.c.b16 %v251, %v250
  %v285 = vpack.c.b16 %v253, %v252
  %318 = vmatprep.subr.bf16.mxu0 0
  %319 = vmatpush1.bf16.msra.mxu0 %v254
  %320 = vmatprep.subr.bf16.mxu0 0
  %321 = vmatpush1.bf16.msra.mxu0 %v255
  %322 = vmatprep.subr.bf16.mxu0 0
  %323 = vmatpush1.bf16.msra.mxu0 %v256
  %324 = vmatprep.subr.bf16.mxu0 0
  %325 = vmatpush1.bf16.msra.mxu0 %v257
  %326 = vmatprep.subr.bf16.mxu0 0
  %327 = vmatpush1.bf16.msra.mxu0 %v258
  %328 = vmatprep.subr.bf16.mxu0 0
  %329 = vmatpush1.bf16.msra.mxu0 %v259
  %330 = vmatprep.subr.bf16.mxu0 0
  %331 = vmatpush1.bf16.msra.mxu0 %v260
  %332 = vmatprep.subr.bf16.mxu0 0
  %333 = vmatpush1.bf16.msra.mxu0 %v261
  %334 = vmatprep.subr.bf16.mxu0 0
  %335 = vmatpush1.bf16.msra.mxu0 %v262
  %336 = vmatprep.subr.bf16.mxu0 0
  %337 = vmatpush1.bf16.msra.mxu0 %v263
  %338 = vmatprep.subr.bf16.mxu0 0
  %339 = vmatpush1.bf16.msra.mxu0 %v264
  %340 = vmatprep.subr.bf16.mxu0 0
  %341 = vmatpush1.bf16.msra.mxu0 %v265
  %342 = vmatprep.subr.bf16.mxu0 0
  %343 = vmatpush1.bf16.msra.mxu0 %v266
  %344 = vmatprep.subr.bf16.mxu0 0
  %345 = vmatpush1.bf16.msra.mxu0 %v267
  %346 = vmatprep.subr.bf16.mxu0 0
  %347 = vmatpush1.bf16.msra.mxu0 %v268
  %348 = vmatprep.subr.bf16.mxu0 0
  %349 = vmatpush1.bf16.msra.mxu0 %v269
  %350 = vmatprep.mubr.bf16.mxu0 %v111
  %351 = vmatmul.mubr.bf16.gmra.mrb[0].mxu0 %v110
  %v352 = vpop.f32.mrb[0].mxu0
  %v353 = vadd.f32 %v90, %v352
  %v354 = vpop.f32.mrb[0].mxu0
  %v355 = vpop.f32.mrb[0].mxu0
  %v356 = vadd.f32 %v90, %v355
  %v357 = vpop.f32.mrb[0].mxu0
  %358 = vmatprep.mubr.bf16.mxu0 %v115
  %359 = vmatmul.mubr.bf16.gmra.mrb[0].mxu0 %v114
  %v360 = vpop.f32.mrb[0].mxu0
  %v361 = vadd.f32 %v90, %v360
  %v362 = vpop.f32.mrb[0].mxu0
  %v363 = vpop.f32.mrb[0].mxu0
  %v364 = vpop.f32.mrb[0].mxu0
  %365 = vdwg.mxu0
  %366 = vmatprep.subr.bf16.mxu0 0
  %367 = vmatpush1.bf16.msra.mxu0 %v270
  %368 = vmatprep.subr.bf16.mxu0 0
  %369 = vmatpush1.bf16.msra.mxu0 %v271
  %370 = vmatprep.subr.bf16.mxu0 0
  %371 = vmatpush1.bf16.msra.mxu0 %v272
  %372 = vmatprep.subr.bf16.mxu0 0
  %373 = vmatpush1.bf16.msra.mxu0 %v273
  %374 = vmatprep.subr.bf16.mxu0 0
  %375 = vmatpush1.bf16.msra.mxu0 %v274
  %376 = vmatprep.subr.bf16.mxu0 0
  %377 = vmatpush1.bf16.msra.mxu0 %v275
  %378 = vmatprep.subr.bf16.mxu0 0
  %379 = vmatpush1.bf16.msra.mxu0 %v276
  %380 = vmatprep.subr.bf16.mxu0 0
  %381 = vmatpush1.bf16.msra.mxu0 %v277
  %382 = vmatprep.subr.bf16.mxu0 0
  %383 = vmatpush1.bf16.msra.mxu0 %v278
  %384 = vmatprep.subr.bf16.mxu0 0
  %385 = vmatpush1.bf16.msra.mxu0 %v279
  %386 = vmatprep.subr.bf16.mxu0 0
  %387 = vmatpush1.bf16.msra.mxu0 %v280
  %388 = vmatprep.subr.bf16.mxu0 0
  %389 = vmatpush1.bf16.msra.mxu0 %v281
  %390 = vmatprep.subr.bf16.mxu0 0
  %391 = vmatpush1.bf16.msra.mxu0 %v282
  %392 = vmatprep.subr.bf16.mxu0 0
  %393 = vmatpush1.bf16.msra.mxu0 %v283
  %394 = vmatprep.subr.bf16.mxu0 0
  %395 = vmatpush1.bf16.msra.mxu0 %v284
  %396 = vmatprep.subr.bf16.mxu0 0
  %397 = vmatpush1.bf16.msra.mxu0 %v285
  %398 = vmatprep.mubr.bf16.mxu0 %v113
  %399 = vmatmul.mubr.bf16.gmra.mrb[0].mxu0 %v112
  %v400 = vpop.f32.mrb[0].mxu0
  %v401 = vadd.f32 %v353, %v400
  %v402 = vpop.f32.mrb[0].mxu0
  %v403 = vpop.f32.mrb[0].mxu0
  %v404 = vadd.f32 %v356, %v403
  %v405 = vpop.f32.mrb[0].mxu0
  %406 = vmatprep.mubr.bf16.mxu0 %v117
  %407 = vmatmul.mubr.bf16.gmra.mrb[0].mxu0 %v116
  %v408 = vpop.f32.mrb[0].mxu0
  %v409 = vadd.f32 %v361, %v408
  %v410 = vpop.f32.mrb[0].mxu0
  %v411 = vpop.f32.mrb[0].mxu0
  %v412 = vpop.f32.mrb[0].mxu0
  %413 = vdwg.mxu0
  %v414 = vmax.f32 %v401, 0.0
  %v415 = vmax.f32 %v404, 0.0
  %v416 = vmax.f32 %v409, 0.0
  %417 = vst [vmem:[%s3] sm:$0xff] %v414
  %418 = vst [vmem:[%s3 + $0x8] sm:$0xff] %v415
  %419 = vst [vmem:[%s3 + $0x10] sm:$0xff] %v416
  // Predicated region
  $region14: #{conv_dqn_forward.5} parent=0 // pred_check
    _
  $region15: #{conv_dqn_forward.5} parent=0 // pred_check_branch
    %421 = sbr.rel (0) target = $region17
  $region16: #{conv_dqn_forward.5} parent=0 // pred_region
    _
  $region17: #{conv_dqn_forward.5} parent=0 // pred_fallthru
    _
  // Predicated region
  $region18: #{conv_dqn_forward.5} parent=0 // pred_check
    _
  $region19: #{conv_dqn_forward.5} parent=0 // pred_check_branch
    %423 = sbr.rel (0) target = $region21
  $region20: #{conv_dqn_forward.5} parent=0 // pred_region
    _
  $region21: #{conv_dqn_forward.5} parent=0 // pred_fallthru
    _

// kernel: conv_dqn_forward.6
$region0: #{conv_dqn_forward.6}
  #allocation0 [shape = 'u32[]', space=smem, size = 0x4, offset = 0x4, fixed_abs, tag = 'smem constant byte address 0x4 - core index']
  #allocation1 [shape = 'u32[144,128]{1,0:T(1,128)}', space=vmem, size = 0x12000, scoped, tag = 'internal scratch']
  %s0 = inlined_call_operand.vmem [shape: bf16[8,640], index: 0, kind: input, shape index: {}]
  %s1 = inlined_call_operand.vmem [shape: bf16[640,128], index: 1, kind: input, shape index: {}]
  %s2 = inlined_call_operand.vmem [shape: f32[1,128], index: 2, kind: input, shape index: {}]
  %s3 = inlined_call_operand.vmem [shape: f32[8,128], index: 3, kind: output, shape index: {}]
  %s4 = sld [smem:[#allocation0]]
  $region22: #{conv_dqn_forward.6} parent=0
    _
  %s6 = ssub.s32 1, %s4
  %s7 = scalar_select 0, %s6, %s4
  // Predicated region
  $region2: #{conv_dqn_forward.6} parent=0 // pred_check
    _
  $region3: #{conv_dqn_forward.6} parent=0 // pred_check_branch
    %9 = sbr.rel (0) target = $region5
  $region4: #{conv_dqn_forward.6} parent=0 // pred_region
    _
  $region5: #{conv_dqn_forward.6} parent=0 // pred_fallthru
    _
  // Predicated region
  $region6: #{conv_dqn_forward.6} parent=0 // pred_check
    _
  $region7: #{conv_dqn_forward.6} parent=0 // pred_check_branch
    %11 = sbr.rel (0) target = $region9
  $region8: #{conv_dqn_forward.6} parent=0 // pred_region
    _
  $region9: #{conv_dqn_forward.6} parent=0 // pred_fallthru
    _
  // Predicated region
  $region10: #{conv_dqn_forward.6} parent=0 // pred_check
    _
  $region11: #{conv_dqn_forward.6} parent=0 // pred_check_branch
    %13 = sbr.rel (0) target = $region13
  $region12: #{conv_dqn_forward.6} parent=0 // pred_region
    _
  $region13: #{conv_dqn_forward.6} parent=0 // pred_fallthru
    _
  %v15 = vld [vmem:[%s0] sm:$0xff]
  %v16 = vld [vmem:[%s0 + $0x8] sm:$0xff]
  %v17 = vld [vmem:[%s0 + $0x10] sm:$0xf]
  %v18 = vld [vmem:[%s1] sm:$0xf]
  %v19 = vld [vmem:[%s1 + $0x4] sm:$0xf]
  %v20 = vld [vmem:[%s1 + $0x8] sm:$0xf]
  %v21 = vld [vmem:[%s1 + $0xc] sm:$0xf]
  %v22 = vld [vmem:[%s1 + $0x10] sm:$0xf]
  %v23 = vld [vmem:[%s1 + $0x14] sm:$0xf]
  %v24 = vld [vmem:[%s1 + $0x18] sm:$0xf]
  %v25 = vld [vmem:[%s1 + $0x1c] sm:$0xf]
  %v26 = vld [vmem:[%s1 + $0x20] sm:$0xf]
  %v27 = vld [vmem:[%s1 + $0x24] sm:$0xf]
  %v28 = vld [vmem:[%s1 + $0x28] sm:$0xf]
  %v29 = vld [vmem:[%s1 + $0x2c] sm:$0xf]
  %v30 = vld [vmem:[%s1 + $0x30] sm:$0xf]
  %v31 = vld [vmem:[%s1 + $0x34] sm:$0xf]
  %v32 = vld [vmem:[%s1 + $0x38] sm:$0xf]
  %v33 = vld [vmem:[%s1 + $0x3c] sm:$0xf]
  %v34 = vld [vmem:[%s1 + $0x40] sm:$0xf]
  %v35 = vld [vmem:[%s1 + $0x44] sm:$0xf]
  %v36 = vld [vmem:[%s1 + $0x48] sm:$0xf]
  %v37 = vld [vmem:[%s1 + $0x4c] sm:$0xf]
  %v38 = vld [vmem:[%s1 + $0x50] sm:$0xf]
  %v39 = vld [vmem:[%s1 + $0x54] sm:$0xf]
  %v40 = vld [vmem:[%s1 + $0x58] sm:$0xf]
  %v41 = vld [vmem:[%s1 + $0x5c] sm:$0xf]
  %v42 = vld [vmem:[%s1 + $0x60] sm:$0xf]
  %v43 = vld [vmem:[%s1 + $0x64] sm:$0xf]
  %v44 = vld [vmem:[%s1 + $0x68] sm:$0xf]
  %v45 = vld [vmem:[%s1 + $0x6c] sm:$0xf]
  %v46 = vld [vmem:[%s1 + $0x70] sm:$0xf]
  %v47 = vld [vmem:[%s1 + $0x74] sm:$0xf]
  %v48 = vld [vmem:[%s1 + $0x78] sm:$0xf]
  %v49 = vld [vmem:[%s1 + $0x7c] sm:$0xf]
  %v50 = vld [vmem:[%s1 + $0x80] sm:$0xf]
  %v51 = vld [vmem:[%s1 + $0x84] sm:$0xf]
  %v52 = vld [vmem:[%s1 + $0x88] sm:$0xf]
  %v53 = vld [vmem:[%s1 + $0x8c] sm:$0xf]
  %v54 = vld [vmem:[%s1 + $0x90] sm:$0xf]
  %v55 = vld [vmem:[%s1 + $0x94] sm:$0xf]
  %v56 = vld [vmem:[%s1 + $0x98] sm:$0xf]
  %v57 = vld [vmem:[%s1 + $0x9c] sm:$0xf]
  %v58 = vld [vmem:[%s1 + $0xa0] sm:$0xf]
  %v59 = vld [vmem:[%s1 + $0xa4] sm:$0xf]
  %v60 = vld [vmem:[%s1 + $0xa8] sm:$0xf]
  %v61 = vld [vmem:[%s1 + $0xac] sm:$0xf]
  %v62 = vld [vmem:[%s1 + $0xb0] sm:$0xf]
  %v63 = vld [vmem:[%s1 + $0xb4] sm:$0xf]
  %v64 = vld [vmem:[%s1 + $0xb8] sm:$0xf]
  %v65 = vld [vmem:[%s1 + $0xbc] sm:$0xf]
  %v66 = vld [vmem:[%s1 + $0xc0] sm:$0xf]
  %v67 = vld [vmem:[%s1 + $0xc4] sm:$0xf]
  %v68 = vld [vmem:[%s1 + $0xc8] sm:$0xf]
  %v69 = vld [vmem:[%s1 + $0xcc] sm:$0xf]
  %v70 = vld [vmem:[%s1 + $0xd0] sm:$0xf]
  %v71 = vld [vmem:[%s1 + $0xd4] sm:$0xf]
  %v72 = vld [vmem:[%s1 + $0xd8] sm:$0xf]
  %v73 = vld [vmem:[%s1 + $0xdc] sm:$0xf]
  %v74 = vld [vmem:[%s1 + $0xe0] sm:$0xf]
  %v75 = vld [vmem:[%s1 + $0xe4] sm:$0xf]
  %v76 = vld [vmem:[%s1 + $0xe8] sm:$0xf]
  %v77 = vld [vmem:[%s1 + $0xec] sm:$0xf]
  %v78 = vld [vmem:[%s1 + $0xf0] sm:$0xf]
  %v79 = vld [vmem:[%s1 + $0xf4] sm:$0xf]
  %v80 = vld [vmem:[%s1 + $0xf8] sm:$0xf]
  %v81 = vld [vmem:[%s1 + $0xfc] sm:$0xf]
  %v82 = vld [vmem:[%s1 + $0x100] sm:$0xf]
  %v83 = vld [vmem:[%s1 + $0x104] sm:$0xf]
  %v84 = vld [vmem:[%s1 + $0x108] sm:$0xf]
  %v85 = vld [vmem:[%s1 + $0x10c] sm:$0xf]
  %v86 = vld [vmem:[%s1 + $0x110] sm:$0xf]
  %v87 = vld [vmem:[%s1 + $0x114] sm:$0xf]
  %v88 = vld [vmem:[%s1 + $0x118] sm:$0xf]
  %v89 = vld [vmem:[%s1 + $0x11c] sm:$0xf]
  %v90 = vld [vmem:[%s1 + $0x120] sm:$0xf]
  %v91 = vld [vmem:[%s1 + $0x124] sm:$0xf]
  %v92 = vld [vmem:[%s1 + $0x128] sm:$0xf]
  %v93 = vld [vmem:[%s1 + $0x12c] sm:$0xf]
  %v94 = vld [vmem:[%s1 + $0x130] sm:$0xf]
  %v95 = vld [vmem:[%s1 + $0x134] sm:$0xf]
  %v96 = vld [vmem:[%s1 + $0x138] sm:$0xf]
  %v97 = vld [vmem:[%s1 + $0x13c] sm:$0xf]
  %v98 = vld [vmem:[%s2] sm:$0x1]
  %v100 = vlaneseq
  %v101 = vshrl.u32 %v100, 7
  %v102 = vsub.s32 0, %v101
  %v103 = vrot.slane %v98, %v102
  %v108 = vunpack.c.l.b16 %v15
  %v109 = vunpack.c.h.b16 %v15
  %v110 = vunpack.c.l.b16 %v16
  %v111 = vunpack.c.h.b16 %v16
  %v112 = vunpack.c.l.b16 %v17
  %v113 = vpack.c.b16 %v108, %v108
  %v114 = vpack.c.b16 %v109, %v109
  %v115 = vpack.c.b16 %v110, %v110
  %v116 = vpack.c.b16 %v111, %v111
  %v117 = vpack.c.b16 %v112, %v112
  %v203 = vunpack.c.l.b16 %v18
  %v204 = vunpack.c.l.b16 %v19
  %v205 = vunpack.c.l.b16 %v20
  %v206 = vunpack.c.l.b16 %v21
  %v207 = vunpack.c.l.b16 %v22
  %v208 = vunpack.c.l.b16 %v23
  %v209 = vunpack.c.l.b16 %v24
  %v210 = vunpack.c.l.b16 %v25
  %v211 = vunpack.c.l.b16 %v26
  %v212 = vunpack.c.l.b16 %v27
  %v213 = vunpack.c.l.b16 %v28
  %v214 = vunpack.c.l.b16 %v29
  %v215 = vunpack.c.l.b16 %v30
  %v216 = vunpack.c.l.b16 %v31
  %v217 = vunpack.c.l.b16 %v32
  %v218 = vunpack.c.l.b16 %v33
  %v219 = vunpack.c.l.b16 %v34
  %v220 = vunpack.c.l.b16 %v35
  %v221 = vunpack.c.l.b16 %v36
  %v222 = vunpack.c.l.b16 %v37
  %v223 = vunpack.c.l.b16 %v38
  %v224 = vunpack.c.l.b16 %v39
  %v225 = vunpack.c.l.b16 %v40
  %v226 = vunpack.c.l.b16 %v41
  %v227 = vunpack.c.l.b16 %v42
  %v228 = vunpack.c.l.b16 %v43
  %v229 = vunpack.c.l.b16 %v44
  %v230 = vunpack.c.l.b16 %v45
  %v231 = vunpack.c.l.b16 %v46
  %v232 = vunpack.c.l.b16 %v47
  %v233 = vunpack.c.l.b16 %v48
  %v234 = vunpack.c.l.b16 %v49
  %v235 = vunpack.c.l.b16 %v50
  %v236 = vunpack.c.l.b16 %v51
  %v237 = vunpack.c.l.b16 %v52
  %v238 = vunpack.c.l.b16 %v53
  %v239 = vunpack.c.l.b16 %v54
  %v240 = vunpack.c.l.b16 %v55
  %v241 = vunpack.c.l.b16 %v56
  %v242 = vunpack.c.l.b16 %v57
  %v243 = vunpack.c.l.b16 %v58
  %v244 = vunpack.c.l.b16 %v59
  %v245 = vunpack.c.l.b16 %v60
  %v246 = vunpack.c.l.b16 %v61
  %v247 = vunpack.c.l.b16 %v62
  %v248 = vunpack.c.l.b16 %v63
  %v249 = vunpack.c.l.b16 %v64
  %v250 = vunpack.c.l.b16 %v65
  %v251 = vunpack.c.l.b16 %v66
  %v252 = vunpack.c.l.b16 %v67
  %v253 = vunpack.c.l.b16 %v68
  %v254 = vunpack.c.l.b16 %v69
  %v255 = vunpack.c.l.b16 %v70
  %v256 = vunpack.c.l.b16 %v71
  %v257 = vunpack.c.l.b16 %v72
  %v258 = vunpack.c.l.b16 %v73
  %v259 = vunpack.c.l.b16 %v74
  %v260 = vunpack.c.l.b16 %v75
  %v261 = vunpack.c.l.b16 %v76
  %v262 = vunpack.c.l.b16 %v77
  %v263 = vunpack.c.l.b16 %v78
  %v264 = vunpack.c.l.b16 %v79
  %v265 = vunpack.c.l.b16 %v80
  %v266 = vunpack.c.l.b16 %v81
  %v267 = vunpack.c.l.b16 %v82
  %v268 = vunpack.c.l.b16 %v83
  %v269 = vunpack.c.l.b16 %v84
  %v270 = vunpack.c.l.b16 %v85
  %v271 = vunpack.c.l.b16 %v86
  %v272 = vunpack.c.l.b16 %v87
  %v273 = vunpack.c.l.b16 %v88
  %v274 = vunpack.c.l.b16 %v89
  %v275 = vunpack.c.l.b16 %v90
  %v276 = vunpack.c.l.b16 %v91
  %v277 = vunpack.c.l.b16 %v92
  %v278 = vunpack.c.l.b16 %v93
  %v279 = vunpack.c.l.b16 %v94
  %v280 = vunpack.c.l.b16 %v95
  %v281 = vunpack.c.l.b16 %v96
  %v282 = vunpack.c.l.b16 %v97
  %v283 = vpack.c.b16 %v204, %v203
  %v284 = vpack.c.b16 %v206, %v205
  %v285 = vpack.c.b16 %v208, %v207
  %v286 = vpack.c.b16 %v210, %v209
  %v287 = vpack.c.b16 %v212, %v211
  %v288 = vpack.c.b16 %v214, %v213
  %v289 = vpack.c.b16 %v216, %v215
  %v290 = vpack.c.b16 %v218, %v217
  %v291 = vpack.c.b16 %v220, %v219
  %v292 = vpack.c.b16 %v222, %v221
  %v293 = vpack.c.b16 %v224, %v223
  %v294 = vpack.c.b16 %v226, %v225
  %v295 = vpack.c.b16 %v228, %v227
  %v296 = vpack.c.b16 %v230, %v229
  %v297 = vpack.c.b16 %v232, %v231
  %v298 = vpack.c.b16 %v234, %v233
  %v299 = vpack.c.b16 %v236, %v235
  %v300 = vpack.c.b16 %v238, %v237
  %v301 = vpack.c.b16 %v240, %v239
  %v302 = vpack.c.b16 %v242, %v241
  %v303 = vpack.c.b16 %v244, %v243
  %v304 = vpack.c.b16 %v246, %v245
  %v305 = vpack.c.b16 %v248, %v247
  %v306 = vpack.c.b16 %v250, %v249
  %v307 = vpack.c.b16 %v252, %v251
  %v308 = vpack.c.b16 %v254, %v253
  %v309 = vpack.c.b16 %v256, %v255
  %v310 = vpack.c.b16 %v258, %v257
  %v311 = vpack.c.b16 %v260, %v259
  %v312 = vpack.c.b16 %v262, %v261
  %v313 = vpack.c.b16 %v264, %v263
  %v314 = vpack.c.b16 %v266, %v265
  %v315 = vpack.c.b16 %v268, %v267
  %v316 = vpack.c.b16 %v270, %v269
  %v317 = vpack.c.b16 %v272, %v271
  %v318 = vpack.c.b16 %v274, %v273
  %v319 = vpack.c.b16 %v276, %v275
  %v320 = vpack.c.b16 %v278, %v277
  %v321 = vpack.c.b16 %v280, %v279
  %v322 = vpack.c.b16 %v282, %v281
  %363 = vmatprep.subr.bf16.mxu0 0
  %364 = vmatpush1.bf16.msra.mxu0 %v283
  %365 = vmatprep.subr.bf16.mxu0 0
  %366 = vmatpush1.bf16.msra.mxu0 %v284
  %367 = vmatprep.subr.bf16.mxu0 0
  %368 = vmatpush1.bf16.msra.mxu0 %v285
  %369 = vmatprep.subr.bf16.mxu0 0
  %370 = vmatpush1.bf16.msra.mxu0 %v286
  %371 = vmatprep.subr.bf16.mxu0 0
  %372 = vmatpush1.bf16.msra.mxu0 %v287
  %373 = vmatprep.subr.bf16.mxu0 0
  %374 = vmatpush1.bf16.msra.mxu0 %v288
  %375 = vmatprep.subr.bf16.mxu0 0
  %376 = vmatpush1.bf16.msra.mxu0 %v289
  %377 = vmatprep.subr.bf16.mxu0 0
  %378 = vmatpush1.bf16.msra.mxu0 %v290
  %379 = vmatprep.subr.bf16.mxu0 0
  %380 = vmatpush1.bf16.msra.mxu0 %v291
  %381 = vmatprep.subr.bf16.mxu0 0
  %382 = vmatpush1.bf16.msra.mxu0 %v292
  %383 = vmatprep.subr.bf16.mxu0 0
  %384 = vmatpush1.bf16.msra.mxu0 %v293
  %385 = vmatprep.subr.bf16.mxu0 0
  %386 = vmatpush1.bf16.msra.mxu0 %v294
  %387 = vmatprep.subr.bf16.mxu0 0
  %388 = vmatpush1.bf16.msra.mxu0 %v295
  %389 = vmatprep.subr.bf16.mxu0 0
  %390 = vmatpush1.bf16.msra.mxu0 %v296
  %391 = vmatprep.subr.bf16.mxu0 0
  %392 = vmatpush1.bf16.msra.mxu0 %v297
  %393 = vmatprep.subr.bf16.mxu0 0
  %394 = vmatpush1.bf16.msra.mxu0 %v298
  %395 = vmatprep.mubr.bf16.mxu0 %v114
  %396 = vmatmul.mubr.bf16.gmra.mrb[0].mxu0 %v113
  %v397 = vpop.f32.mrb[0].mxu0
  %v398 = vadd.f32 %v103, %v397
  %v399 = vpop.f32.mrb[0].mxu0
  %v400 = vpop.f32.mrb[0].mxu0
  %v401 = vpop.f32.mrb[0].mxu0
  %402 = vdwg.mxu0
  %403 = vmatprep.subr.bf16.mxu0 0
  %404 = vmatpush1.bf16.msra.mxu0 %v299
  %405 = vmatprep.subr.bf16.mxu0 0
  %406 = vmatpush1.bf16.msra.mxu0 %v300
  %407 = vmatprep.subr.bf16.mxu0 0
  %408 = vmatpush1.bf16.msra.mxu0 %v301
  %409 = vmatprep.subr.bf16.mxu0 0
  %410 = vmatpush1.bf16.msra.mxu0 %v302
  %411 = vmatprep.subr.bf16.mxu0 0
  %412 = vmatpush1.bf16.msra.mxu0 %v303
  %413 = vmatprep.subr.bf16.mxu0 0
  %414 = vmatpush1.bf16.msra.mxu0 %v304
  %415 = vmatprep.subr.bf16.mxu0 0
  %416 = vmatpush1.bf16.msra.mxu0 %v305
  %417 = vmatprep.subr.bf16.mxu0 0
  %418 = vmatpush1.bf16.msra.mxu0 %v306
  %419 = vmatprep.subr.bf16.mxu0 0
  %420 = vmatpush1.bf16.msra.mxu0 %v307
  %421 = vmatprep.subr.bf16.mxu0 0
  %422 = vmatpush1.bf16.msra.mxu0 %v308
  %423 = vmatprep.subr.bf16.mxu0 0
  %424 = vmatpush1.bf16.msra.mxu0 %v309
  %425 = vmatprep.subr.bf16.mxu0 0
  %426 = vmatpush1.bf16.msra.mxu0 %v310
  %427 = vmatprep.subr.bf16.mxu0 0
  %428 = vmatpush1.bf16.msra.mxu0 %v311
  %429 = vmatprep.subr.bf16.mxu0 0
  %430 = vmatpush1.bf16.msra.mxu0 %v312
  %431 = vmatprep.subr.bf16.mxu0 0
  %432 = vmatpush1.bf16.msra.mxu0 %v313
  %433 = vmatprep.subr.bf16.mxu0 0
  %434 = vmatpush1.bf16.msra.mxu0 %v314
  %435 = vmatprep.mubr.bf16.mxu0 %v116
  %436 = vmatmul.mubr.bf16.gmra.mrb[0].mxu0 %v115
  %v437 = vpop.f32.mrb[0].mxu0
  %v438 = vadd.f32 %v398, %v437
  %v439 = vpop.f32.mrb[0].mxu0
  %v440 = vpop.f32.mrb[0].mxu0
  %v441 = vpop.f32.mrb[0].mxu0
  %442 = vdwg.mxu0
  %443 = vmatprep.subr.bf16.mxu0 0
  %444 = vmatpush1.bf16.msra.mxu0 %v315
  %445 = vmatprep.subr.bf16.mxu0 0
  %446 = vmatpush1.bf16.msra.mxu0 %v316
  %447 = vmatprep.subr.bf16.mxu0 0
  %448 = vmatpush1.bf16.msra.mxu0 %v317
  %449 = vmatprep.subr.bf16.mxu0 0
  %450 = vmatpush1.bf16.msra.mxu0 %v318
  %451 = vmatprep.subr.bf16.mxu0 0
  %452 = vmatpush1.bf16.msra.mxu0 %v319
  %453 = vmatprep.subr.bf16.mxu0 0
  %454 = vmatpush1.bf16.msra.mxu0 %v320
  %455 = vmatprep.subr.bf16.mxu0 0
  %456 = vmatpush1.bf16.msra.mxu0 %v321
  %457 = vmatprep.subr.bf16.mxu0 0
  %458 = vmatpush1.bf16.msra.mxu0 %v322
  %459 = vmatprep.subr.bf16.mxu0 0
  %460 = vmatpush1.bf16.msra.mxu0 0
  %461 = vmatprep.subr.bf16.mxu0 0
  %462 = vmatpush1.bf16.msra.mxu0 0
  %463 = vmatprep.subr.bf16.mxu0 0
  %464 = vmatpush1.bf16.msra.mxu0 0
  %465 = vmatprep.subr.bf16.mxu0 0
  %466 = vmatpush1.bf16.msra.mxu0 0
  %467 = vmatprep.subr.bf16.mxu0 0
  %468 = vmatpush1.bf16.msra.mxu0 0
  %469 = vmatprep.subr.bf16.mxu0 0
  %470 = vmatpush1.bf16.msra.mxu0 0
  %471 = vmatprep.subr.bf16.mxu0 0
  %472 = vmatpush1.bf16.msra.mxu0 0
  %473 = vmatprep.subr.bf16.mxu0 0
  %474 = vmatpush1.bf16.msra.mxu0 0
  %475 = vmatprep.mubr.bf16.mxu0 0
  %476 = vmatmul.mubr.bf16.gmra.mrb[0].mxu0 %v117
  %v477 = vpop.f32.mrb[0].mxu0
  %v478 = vadd.f32 %v438, %v477
  %v479 = vpop.f32.mrb[0].mxu0
  %v480 = vpop.f32.mrb[0].mxu0
  %v481 = vpop.f32.mrb[0].mxu0
  %482 = vdwg.mxu0
  %v483 = vmax.f32 %v478, 0.0
  %484 = vst [vmem:[%s3] sm:$0xff] %v483
  // Predicated region
  $region14: #{conv_dqn_forward.6} parent=0 // pred_check
    _
  $region15: #{conv_dqn_forward.6} parent=0 // pred_check_branch
    %486 = sbr.rel (0) target = $region17
  $region16: #{conv_dqn_forward.6} parent=0 // pred_region
    _
  $region17: #{conv_dqn_forward.6} parent=0 // pred_fallthru
    _
  // Predicated region
  $region18: #{conv_dqn_forward.6} parent=0 // pred_check
    _
  $region19: #{conv_dqn_forward.6} parent=0 // pred_check_branch
    %488 = sbr.rel (0) target = $region21
  $region20: #{conv_dqn_forward.6} parent=0 // pred_region
    _
  $region21: #{conv_dqn_forward.6} parent=0 // pred_fallthru
    _

// kernel: conv_dqn_forward.7
$region0: #{conv_dqn_forward.7}
  #allocation0 [shape = 'u32[]', space=smem, size = 0x4, offset = 0x4, fixed_abs, tag = 'smem constant byte address 0x4 - core index']
  #allocation1 [shape = 'u32[144,128]{1,0:T(1,128)}', space=vmem, size = 0x12000, scoped, tag = 'internal scratch']
  %s0 = inlined_call_operand.vmem [shape: bf16[8,128], index: 0, kind: input, shape index: {}]
  %s1 = inlined_call_operand.vmem [shape: bf16[128,128], index: 1, kind: input, shape index: {}]
  %s2 = inlined_call_operand.vmem [shape: f32[1,128], index: 2, kind: input, shape index: {}]
  %s3 = inlined_call_operand.vmem [shape: bf16[128,256], index: 3, kind: input, shape index: {}]
  %s4 = inlined_call_operand.vmem [shape: f32[1,256], index: 4, kind: input, shape index: {}]
  %s5 = inlined_call_operand.vmem [shape: bf16[256,128], index: 5, kind: input, shape index: {}]
  %s6 = inlined_call_operand.vmem [shape: f32[1,128], index: 6, kind: input, shape index: {}]
  %s7 = inlined_call_operand.vmem [shape: f32[8,128], index: 7, kind: output, shape index: {}]
  %s8 = sld [smem:[#allocation0]]
  $region38: #{conv_dqn_forward.7} parent=0
    _
  %s10 = ssub.s32 1, %s8
  %s11 = scalar_select 0, %s10, %s8
  // Predicated region
  $region2: #{conv_dqn_forward.7} parent=0 // pred_check
    _
  $region3: #{conv_dqn_forward.7} parent=0 // pred_check_branch
    %13 = sbr.rel (0) target = $region5
  $region4: #{conv_dqn_forward.7} parent=0 // pred_region
    _
  $region5: #{conv_dqn_forward.7} parent=0 // pred_fallthru
    _
  // Predicated region
  $region6: #{conv_dqn_forward.7} parent=0 // pred_check
    _
  $region7: #{conv_dqn_forward.7} parent=0 // pred_check_branch
    %15 = sbr.rel (0) target = $region9
  $region8: #{conv_dqn_forward.7} parent=0 // pred_region
    _
  $region9: #{conv_dqn_forward.7} parent=0 // pred_fallthru
    _
  // Predicated region
  $region10: #{conv_dqn_forward.7} parent=0 // pred_check
    _
  $region11: #{conv_dqn_forward.7} parent=0 // pred_check_branch
    %17 = sbr.rel (0) target = $region13
  $region12: #{conv_dqn_forward.7} parent=0 // pred_region
    _
  $region13: #{conv_dqn_forward.7} parent=0 // pred_fallthru
    _
  // Predicated region
  $region14: #{conv_dqn_forward.7} parent=0 // pred_check
    _
  $region15: #{conv_dqn_forward.7} parent=0 // pred_check_branch
    %19 = sbr.rel (0) target = $region17
  $region16: #{conv_dqn_forward.7} parent=0 // pred_region
    _
  $region17: #{conv_dqn_forward.7} parent=0 // pred_fallthru
    _
  // Predicated region
  $region18: #{conv_dqn_forward.7} parent=0 // pred_check
    _
  $region19: #{conv_dqn_forward.7} parent=0 // pred_check_branch
    %21 = sbr.rel (0) target = $region21
  $region20: #{conv_dqn_forward.7} parent=0 // pred_region
    _
  $region21: #{conv_dqn_forward.7} parent=0 // pred_fallthru
    _
  // Predicated region
  $region22: #{conv_dqn_forward.7} parent=0 // pred_check
    _
  $region23: #{conv_dqn_forward.7} parent=0 // pred_check_branch
    %23 = sbr.rel (0) target = $region25
  $region24: #{conv_dqn_forward.7} parent=0 // pred_region
    _
  $region25: #{conv_dqn_forward.7} parent=0 // pred_fallthru
    _
  // Predicated region
  $region26: #{conv_dqn_forward.7} parent=0 // pred_check
    _
  $region27: #{conv_dqn_forward.7} parent=0 // pred_check_branch
    %25 = sbr.rel (0) target = $region29
  $region28: #{conv_dqn_forward.7} parent=0 // pred_region
    _
  $region29: #{conv_dqn_forward.7} parent=0 // pred_fallthru
    _
  %v27 = vld [vmem:[%s0] sm:$0xf]
  %v28 = vld [vmem:[%s1] sm:$0xf]
  %v29 = vld [vmem:[%s1 + $0x4] sm:$0xf]
  %v30 = vld [vmem:[%s1 + $0x8] sm:$0xf]
  %v31 = vld [vmem:[%s1 + $0xc] sm:$0xf]
  %v32 = vld [vmem:[%s1 + $0x10] sm:$0xf]
  %v33 = vld [vmem:[%s1 + $0x14] sm:$0xf]
  %v34 = vld [vmem:[%s1 + $0x18] sm:$0xf]
  %v35 = vld [vmem:[%s1 + $0x1c] sm:$0xf]
  %v36 = vld [vmem:[%s1 + $0x20] sm:$0xf]
  %v37 = vld [vmem:[%s1 + $0x24] sm:$0xf]
  %v38 = vld [vmem:[%s1 + $0x28] sm:$0xf]
  %v39 = vld [vmem:[%s1 + $0x2c] sm:$0xf]
  %v40 = vld [vmem:[%s1 + $0x30] sm:$0xf]
  %v41 = vld [vmem:[%s1 + $0x34] sm:$0xf]
  %v42 = vld [vmem:[%s1 + $0x38] sm:$0xf]
  %v43 = vld [vmem:[%s1 + $0x3c] sm:$0xf]
  %v44 = vld [vmem:[%s2] sm:$0x1]
  %v46 = vlaneseq
  %v47 = vshrl.u32 %v46, 7
  %v48 = vsub.s32 0, %v47
  %v49 = vrot.slane %v44, %v48
  %v67 = vunpack.c.l.b16 %v28
  %v68 = vunpack.c.l.b16 %v29
  %v69 = vunpack.c.l.b16 %v30
  %v70 = vunpack.c.l.b16 %v31
  %v71 = vunpack.c.l.b16 %v32
  %v72 = vunpack.c.l.b16 %v33
  %v73 = vunpack.c.l.b16 %v34
  %v74 = vunpack.c.l.b16 %v35
  %v75 = vunpack.c.l.b16 %v36
  %v76 = vunpack.c.l.b16 %v37
  %v77 = vunpack.c.l.b16 %v38
  %v78 = vunpack.c.l.b16 %v39
  %v79 = vunpack.c.l.b16 %v40
  %v80 = vunpack.c.l.b16 %v41
  %v81 = vunpack.c.l.b16 %v42
  %v82 = vunpack.c.l.b16 %v43
  %v83 = vpack.c.b16 %v68, %v67
  %v84 = vpack.c.b16 %v70, %v69
  %v85 = vpack.c.b16 %v72, %v71
  %v86 = vpack.c.b16 %v74, %v73
  %v87 = vpack.c.b16 %v76, %v75
  %v88 = vpack.c.b16 %v78, %v77
  %v89 = vpack.c.b16 %v80, %v79
  %v90 = vpack.c.b16 %v82, %v81
  %99 = vmatprep.subr.bf16.mxu0 0
  %100 = vmatpush1.bf16.msra.mxu0 %v83
  %101 = vmatprep.subr.bf16.mxu0 0
  %102 = vmatpush1.bf16.msra.mxu0 %v84
  %103 = vmatprep.subr.bf16.mxu0 0
  %104 = vmatpush1.bf16.msra.mxu0 %v85
  %105 = vmatprep.subr.bf16.mxu0 0
  %106 = vmatpush1.bf16.msra.mxu0 %v86
  %107 = vmatprep.subr.bf16.mxu0 0
  %108 = vmatpush1.bf16.msra.mxu0 %v87
  %109 = vmatprep.subr.bf16.mxu0 0
  %110 = vmatpush1.bf16.msra.mxu0 %v88
  %111 = vmatprep.subr.bf16.mxu0 0
  %112 = vmatpush1.bf16.msra.mxu0 %v89
  %113 = vmatprep.subr.bf16.mxu0 0
  %114 = vmatpush1.bf16.msra.mxu0 %v90
  %115 = vmatprep.subr.bf16.mxu0 0
  %116 = vmatpush1.bf16.msra.mxu0 0
  %117 = vmatprep.subr.bf16.mxu0 0
  %118 = vmatpush1.bf16.msra.mxu0 0
  %119 = vmatprep.subr.bf16.mxu0 0
  %120 = vmatpush1.bf16.msra.mxu0 0
  %121 = vmatprep.subr.bf16.mxu0 0
  %122 = vmatpush1.bf16.msra.mxu0 0
  %123 = vmatprep.subr.bf16.mxu0 0
  %124 = vmatpush1.bf16.msra.mxu0 0
  %125 = vmatprep.subr.bf16.mxu0 0
  %126 = vmatpush1.bf16.msra.mxu0 0
  %127 = vmatprep.subr.bf16.mxu0 0
  %128 = vmatpush1.bf16.msra.mxu0 0
  %129 = vmatprep.subr.bf16.mxu0 0
  %130 = vmatpush1.bf16.msra.mxu0 0
  %131 = vmatprep.mubr.bf16.mxu0 0
  %132 = vmatmul.mubr.bf16.gmra.mrb[0].mxu0 %v27
  %v133 = vpop.f32.mrb[0].mxu0
  %v134 = vadd.f32 %v49, %v133
  %v135 = vpop.f32.mrb[0].mxu0
  %v136 = vpop.f32.mrb[0].mxu0
  %v137 = vpop.f32.mrb[0].mxu0
  %138 = vdwg.mxu0
  %v139 = vmax.f32 %v134, 0.0
  %v140 = vpack.c.bf16 %v139, %v139
  %v141 = vld [vmem:[%s3] sm:$0xff]
  %v142 = vld [vmem:[%s3 + $0x8] sm:$0xff]
  %v143 = vld [vmem:[%s3 + $0x10] sm:$0xff]
  %v144 = vld [vmem:[%s3 + $0x18] sm:$0xff]
  %v145 = vld [vmem:[%s3 + $0x20] sm:$0xff]
  %v146 = vld [vmem:[%s3 + $0x28] sm:$0xff]
  %v147 = vld [vmem:[%s3 + $0x30] sm:$0xff]
  %v148 = vld [vmem:[%s3 + $0x38] sm:$0xff]
  %v149 = vld [vmem:[%s3 + $0x40] sm:$0xff]
  %v150 = vld [vmem:[%s3 + $0x48] sm:$0xff]
  %v151 = vld [vmem:[%s3 + $0x50] sm:$0xff]
  %v152 = vld [vmem:[%s3 + $0x58] sm:$0xff]
  %v153 = vld [vmem:[%s3 + $0x60] sm:$0xff]
  %v154 = vld [vmem:[%s3 + $0x68] sm:$0xff]
  %v155 = vld [vmem:[%s3 + $0x70] sm:$0xff]
  %v156 = vld [vmem:[%s3 + $0x78] sm:$0xff]
  %v157 = vld [vmem:[%s4] sm:$0x3]
  %v159 = vlaneseq
  %v160 = vshrl.u32 %v159, 7
  %v161 = vsub.s32 0, %v160
  %v162 = vrot.slane %v157, %v161
  %v163 = vlaneseq
  %v164 = vshrl.u32 %v163, 7
  %v165 = vsub.s32 1, %v164
  %v166 = vrot.slane %v157, %v165
  %v185 = vunpack.c.l.b16 %v141
  %v186 = vunpack.c.h.b16 %v141
  %v187 = vunpack.c.l.b16 %v142
  %v188 = vunpack.c.h.b16 %v142
  %v189 = vunpack.c.l.b16 %v143
  %v190 = vunpack.c.h.b16 %v143
  %v191 = vunpack.c.l.b16 %v144
  %v192 = vunpack.c.h.b16 %v144
  %v193 = vunpack.c.l.b16 %v145
  %v194 = vunpack.c.h.b16 %v145
  %v195 = vunpack.c.l.b16 %v146
  %v196 = vunpack.c.h.b16 %v146
  %v197 = vunpack.c.l.b16 %v147
  %v198 = vunpack.c.h.b16 %v147
  %v199 = vunpack.c.l.b16 %v148
  %v200 = vunpack.c.h.b16 %v148
  %v201 = vunpack.c.l.b16 %v149
  %v202 = vunpack.c.h.b16 %v149
  %v203 = vunpack.c.l.b16 %v150
  %v204 = vunpack.c.h.b16 %v150
  %v205 = vunpack.c.l.b16 %v151
  %v206 = vunpack.c.h.b16 %v151
  %v207 = vunpack.c.l.b16 %v152
  %v208 = vunpack.c.h.b16 %v152
  %v209 = vunpack.c.l.b16 %v153
  %v210 = vunpack.c.h.b16 %v153
  %v211 = vunpack.c.l.b16 %v154
  %v212 = vunpack.c.h.b16 %v154
  %v213 = vunpack.c.l.b16 %v155
  %v214 = vunpack.c.h.b16 %v155
  %v215 = vunpack.c.l.b16 %v156
  %v216 = vunpack.c.h.b16 %v156
  %v217 = vpack.c.b16 %v187, %v185
  %v218 = vpack.c.b16 %v188, %v186
  %v219 = vpack.c.b16 %v191, %v189
  %v220 = vpack.c.b16 %v192, %v190
  %v221 = vpack.c.b16 %v195, %v193
  %v222 = vpack.c.b16 %v196, %v194
  %v223 = vpack.c.b16 %v199, %v197
  %v224 = vpack.c.b16 %v200, %v198
  %v225 = vpack.c.b16 %v203, %v201
  %v226 = vpack.c.b16 %v204, %v202
  %v227 = vpack.c.b16 %v207, %v205
  %v228 = vpack.c.b16 %v208, %v206
  %v229 = vpack.c.b16 %v211, %v209
  %v230 = vpack.c.b16 %v212, %v210
  %v231 = vpack.c.b16 %v215, %v213
  %v232 = vpack.c.b16 %v216, %v214
  %249 = vmatprep.subr.bf16.mxu0 %v218
  %250 = vmatpush1.bf16.msra.mxu0 %v217
  %251 = vmatprep.subr.bf16.mxu0 %v220
  %252 = vmatpush1.bf16.msra.mxu0 %v219
  %253 = vmatprep.subr.bf16.mxu0 %v222
  %254 = vmatpush1.bf16.msra.mxu0 %v221
  %255 = vmatprep.subr.bf16.mxu0 %v224
  %256 = vmatpush1.bf16.msra.mxu0 %v223
  %257 = vmatprep.subr.bf16.mxu0 %v226
  %258 = vmatpush1.bf16.msra.mxu0 %v225
  %259 = vmatprep.subr.bf16.mxu0 %v228
  %260 = vmatpush1.bf16.msra.mxu0 %v227
  %261 = vmatprep.subr.bf16.mxu0 %v230
  %262 = vmatpush1.bf16.msra.mxu0 %v229
  %263 = vmatprep.subr.bf16.mxu0 %v232
  %264 = vmatpush1.bf16.msra.mxu0 %v231
  %265 = vmatprep.subr.bf16.mxu0 0
  %266 = vmatpush1.bf16.msra.mxu0 0
  %267 = vmatprep.subr.bf16.mxu0 0
  %268 = vmatpush1.bf16.msra.mxu0 0
  %269 = vmatprep.subr.bf16.mxu0 0
  %270 = vmatpush1.bf16.msra.mxu0 0
  %271 = vmatprep.subr.bf16.mxu0 0
  %272 = vmatpush1.bf16.msra.mxu0 0
  %273 = vmatprep.subr.bf16.mxu0 0
  %274 = vmatpush1.bf16.msra.mxu0 0
  %275 = vmatprep.subr.bf16.mxu0 0
  %276 = vmatpush1.bf16.msra.mxu0 0
  %277 = vmatprep.subr.bf16.mxu0 0
  %278 = vmatpush1.bf16.msra.mxu0 0
  %279 = vmatprep.subr.bf16.mxu0 0
  %280 = vmatpush1.bf16.msra.mxu0 0
  %281 = vmatprep.mubr.bf16.mxu0 0
  %282 = vmatmul.mubr.bf16.gmra.mrb[0].mxu0 %v140
  %v283 = vpop.f32.mrb[0].mxu0
  %v284 = vadd.f32 %v162, %v283
  %v285 = vpop.f32.mrb[0].mxu0
  %v286 = vadd.f32 %v166, %v285
  %v287 = vpop.f32.mrb[0].mxu0
  %v288 = vpop.f32.mrb[0].mxu0
  %289 = vdwg.mxu0
  %v290 = vmax.f32 %v284, 0.0
  %v291 = vmax.f32 %v286, 0.0
  %v292 = vpack.c.bf16 %v290, %v290
  %v293 = vpack.c.bf16 %v291, %v291
  %v294 = vld [vmem:[%s5] sm:$0xf]
  %v295 = vld [vmem:[%s5 + $0x4] sm:$0xf]
  %v296 = vld [vmem:[%s5 + $0x8] sm:$0xf]
  %v297 = vld [vmem:[%s5 + $0xc] sm:$0xf]
  %v298 = vld [vmem:[%s5 + $0x10] sm:$0xf]
  %v299 = vld [vmem:[%s5 + $0x14] sm:$0xf]
  %v300 = vld [vmem:[%s5 + $0x18] sm:$0xf]
  %v301 = vld [vmem:[%s5 + $0x1c] sm:$0xf]
  %v302 = vld [vmem:[%s5 + $0x20] sm:$0xf]
  %v303 = vld [vmem:[%s5 + $0x24] sm:$0xf]
  %v304 = vld [vmem:[%s5 + $0x28] sm:$0xf]
  %v305 = vld [vmem:[%s5 + $0x2c] sm:$0xf]
  %v306 = vld [vmem:[%s5 + $0x30] sm:$0xf]
  %v307 = vld [vmem:[%s5 + $0x34] sm:$0xf]
  %v308 = vld [vmem:[%s5 + $0x38] sm:$0xf]
  %v309 = vld [vmem:[%s5 + $0x3c] sm:$0xf]
  %v310 = vld [vmem:[%s5 + $0x40] sm:$0xf]
  %v311 = vld [vmem:[%s5 + $0x44] sm:$0xf]
  %v312 = vld [vmem:[%s5 + $0x48] sm:$0xf]
  %v313 = vld [vmem:[%s5 + $0x4c] sm:$0xf]
  %v314 = vld [vmem:[%s5 + $0x50] sm:$0xf]
  %v315 = vld [vmem:[%s5 + $0x54] sm:$0xf]
  %v316 = vld [vmem:[%s5 + $0x58] sm:$0xf]
  %v317 = vld [vmem:[%s5 + $0x5c] sm:$0xf]
  %v318 = vld [vmem:[%s5 + $0x60] sm:$0xf]
  %v319 = vld [vmem:[%s5 + $0x64] sm:$0xf]
  %v320 = vld [vmem:[%s5 + $0x68] sm:$0xf]
  %v321 = vld [vmem:[%s5 + $0x6c] sm:$0xf]
  %v322 = vld [vmem:[%s5 + $0x70] sm:$0xf]
  %v323 = vld [vmem:[%s5 + $0x74] sm:$0xf]
  %v324 = vld [vmem:[%s5 + $0x78] sm:$0xf]
  %v325 = vld [vmem:[%s5 + $0x7c] sm:$0xf]
  %v326 = vld [vmem:[%s6] sm:$0x1]
  %v328 = vlaneseq
  %v329 = vshrl.u32 %v328, 7
  %v330 = vsub.s32 0, %v329
  %v331 = vrot.slane %v326, %v330
  %v365 = vunpack.c.l.b16 %v294
  %v366 = vunpack.c.l.b16 %v295
  %v367 = vunpack.c.l.b16 %v296
  %v368 = vunpack.c.l.b16 %v297
  %v369 = vunpack.c.l.b16 %v298
  %v370 = vunpack.c.l.b16 %v299
  %v371 = vunpack.c.l.b16 %v300
  %v372 = vunpack.c.l.b16 %v301
  %v373 = vunpack.c.l.b16 %v302
  %v374 = vunpack.c.l.b16 %v303
  %v375 = vunpack.c.l.b16 %v304
  %v376 = vunpack.c.l.b16 %v305
  %v377 = vunpack.c.l.b16 %v306
  %v378 = vunpack.c.l.b16 %v307
  %v379 = vunpack.c.l.b16 %v308
  %v380 = vunpack.c.l.b16 %v309
  %v381 = vunpack.c.l.b16 %v310
  %v382 = vunpack.c.l.b16 %v311
  %v383 = vunpack.c.l.b16 %v312
  %v384 = vunpack.c.l.b16 %v313
  %v385 = vunpack.c.l.b16 %v314
  %v386 = vunpack.c.l.b16 %v315
  %v387 = vunpack.c.l.b16 %v316
  %v388 = vunpack.c.l.b16 %v317
  %v389 = vunpack.c.l.b16 %v318
  %v390 = vunpack.c.l.b16 %v319
  %v391 = vunpack.c.l.b16 %v320
  %v392 = vunpack.c.l.b16 %v321
  %v393 = vunpack.c.l.b16 %v322
  %v394 = vunpack.c.l.b16 %v323
  %v395 = vunpack.c.l.b16 %v324
  %v396 = vunpack.c.l.b16 %v325
  %v397 = vpack.c.b16 %v366, %v365
  %v398 = vpack.c.b16 %v368, %v367
  %v399 = vpack.c.b16 %v370, %v369
  %v400 = vpack.c.b16 %v372, %v371
  %v401 = vpack.c.b16 %v374, %v373
  %v402 = vpack.c.b16 %v376, %v375
  %v403 = vpack.c.b16 %v378, %v377
  %v404 = vpack.c.b16 %v380, %v379
  %v405 = vpack.c.b16 %v382, %v381
  %v406 = vpack.c.b16 %v384, %v383
  %v407 = vpack.c.b16 %v386, %v385
  %v408 = vpack.c.b16 %v388, %v387
  %v409 = vpack.c.b16 %v390, %v389
  %v410 = vpack.c.b16 %v392, %v391
  %v411 = vpack.c.b16 %v394, %v393
  %v412 = vpack.c.b16 %v396, %v395
  %429 = vmatprep.subr.bf16.mxu0 0
  %430 = vmatpush1.bf16.msra.mxu0 %v397
  %431 = vmatprep.subr.bf16.mxu0 0
  %432 = vmatpush1.bf16.msra.mxu0 %v398
  %433 = vmatprep.subr.bf16.mxu0 0
  %434 = vmatpush1.bf16.msra.mxu0 %v399
  %435 = vmatprep.subr.bf16.mxu0 0
  %436 = vmatpush1.bf16.msra.mxu0 %v400
  %437 = vmatprep.subr.bf16.mxu0 0
  %438 = vmatpush1.bf16.msra.mxu0 %v401
  %439 = vmatprep.subr.bf16.mxu0 0
  %440 = vmatpush1.bf16.msra.mxu0 %v402
  %441 = vmatprep.subr.bf16.mxu0 0
  %442 = vmatpush1.bf16.msra.mxu0 %v403
  %443 = vmatprep.subr.bf16.mxu0 0
  %444 = vmatpush1.bf16.msra.mxu0 %v404
  %445 = vmatprep.subr.bf16.mxu0 0
  %446 = vmatpush1.bf16.msra.mxu0 %v405
  %447 = vmatprep.subr.bf16.mxu0 0
  %448 = vmatpush1.bf16.msra.mxu0 %v406
  %449 = vmatprep.subr.bf16.mxu0 0
  %450 = vmatpush1.bf16.msra.mxu0 %v407
  %451 = vmatprep.subr.bf16.mxu0 0
  %452 = vmatpush1.bf16.msra.mxu0 %v408
  %453 = vmatprep.subr.bf16.mxu0 0
  %454 = vmatpush1.bf16.msra.mxu0 %v409
  %455 = vmatprep.subr.bf16.mxu0 0
  %456 = vmatpush1.bf16.msra.mxu0 %v410
  %457 = vmatprep.subr.bf16.mxu0 0
  %458 = vmatpush1.bf16.msra.mxu0 %v411
  %459 = vmatprep.subr.bf16.mxu0 0
  %460 = vmatpush1.bf16.msra.mxu0 %v412
  %461 = vmatprep.mubr.bf16.mxu0 %v293
  %462 = vmatmul.mubr.bf16.gmra.mrb[0].mxu0 %v292
  %v463 = vpop.f32.mrb[0].mxu0
  %v464 = vadd.f32 %v331, %v463
  %v465 = vpop.f32.mrb[0].mxu0
  %v466 = vpop.f32.mrb[0].mxu0
  %v467 = vpop.f32.mrb[0].mxu0
  %468 = vdwg.mxu0
  %469 = vst [vmem:[%s7] sm:$0xff] %v464
  // Predicated region
  $region30: #{conv_dqn_forward.7} parent=0 // pred_check
    _
  $region31: #{conv_dqn_forward.7} parent=0 // pred_check_branch
    %471 = sbr.rel (0) target = $region33
  $region32: #{conv_dqn_forward.7} parent=0 // pred_region
    _
  $region33: #{conv_dqn_forward.7} parent=0 // pred_fallthru
    _
  // Predicated region
  $region34: #{conv_dqn_forward.7} parent=0 // pred_check
    _
  $region35: #{conv_dqn_forward.7} parent=0 // pred_check_branch
    %473 = sbr.rel (0) target = $region37
  $region36: #{conv_dqn_forward.7} parent=0 // pred_region
    _
  $region37: #{conv_dqn_forward.7} parent=0 // pred_fallthru
    _

</llo_original>
